<compile_context>
chip_gen: v7x
topology: tpu7x:2x2x1
jax: 0.10.0
libtpu: 0.0.40
codegen_flags: <defaults>
</compile_context>

<pallas_src>
import jax
import jax.numpy as jnp
from jax.experimental import pallas as pl
from jax.experimental.pallas import tpu as pltpu


# ----------------------------- Pallas kernel --------------------------------
def gatr_to_e_kernel(
    rel_ref,        # SMEM  [E]       int32  (scalar-prefetched rel_size)
    x_e_ref,        # VMEM  [N_e,HP]  f32    (aliased to output)
    x_r_ref,        # VMEM  [E,D]     f32
    edge_ref,       # VMEM  [2,E]     int32
    w_all_ref,      # VMEM  [D,3*HP]  f32
    b_row_ref,      # VMEM  [1,3*HP]  f32
    ws_all_ref,     # VMEM  [3,D]     f32    (W_j @ a_rel_j, packed per stage)
    rel_bias_ref,   # VMEM  [3,1]     f32    (b_j . a_rel_j)
    a_node_ref,     # VMEM  [3,HP]    f32
    out_ref,        # VMEM  [N_e,HP]  f32
    xr_g_ref,       # VMEM scratch [E,D] f32 (gathered x_r rows)
):
    f32 = jnp.float32
    bf16 = jnp.bfloat16
    N_e, HP = out_ref.shape
    E, D = x_r_ref.shape

    # ---- real gather (no [E,E] one-hot): x_r rows indexed by rel_size -------
    # rel_size sits in SMEM via scalar prefetch; each row is a dynamic-slice
    # load from VMEM. E is tiny here, so a static unroll is fine.
    # TODO(synk): for large E use pl.loop / a pipelined HBM DMA gather.
    for k in range(E):
        xr_g_ref[pl.ds(k, 1), :] = x_r_ref[pl.ds(rel_ref[k], 1), :]

    x_r = x_r_ref[...]                                               # [E, D]
    x_r_g = xr_g_ref[...]                                            # [E, D]

    # fused relation linears on the gathered rows: e_r[rel_size], all 3 stages.
    er_g_all = (jnp.dot(x_r_g, w_all_ref[...], preferred_element_type=f32)
                + b_row_ref[...])                                    # [E, 3*HP]

    # hoisted per-edge relation attention scores for all 3 stages (E on lanes):
    # rel_score[j, k] = (x_r[k] @ W_j + b_j) . a_rel_j
    rel_score = (jax.lax.dot_general(ws_all_ref[...], x_r,
                                     (((1,), (1,)), ((), ())),
                                     preferred_element_type=f32)
                 + rel_bias_ref[...])                                # [3, E]

    a_node_all = a_node_ref[...]                                     # [3, HP]
    edge_all = edge_ref[...]                                         # [2, E]
    node_iota = jax.lax.broadcasted_iota(jnp.int32, (N_e, E), 0)
    neg = jnp.float32(-1e30)                                         # finite: 0*neg == 0
    eps = jnp.float32(1e-16)

    def stage(xe, j, edge_row):
        # incidence one-hot rebuilt per stage from edge_index (no dense HBM
        # operand, no persistent bool masks); bf16 is exact for 0/1.
        idx_row = edge_all[edge_row:edge_row + 1, :]                 # [1, E] int32
        inc = node_iota == idx_row                                   # [N_e, E] bool
        a_inc = inc.astype(bf16)

        # attention logits, per-edge vectors kept in [1, E] row layout.
        z = jax.lax.dot_general(a_node_all[j:j + 1, :], xe,
                                (((1,), (1,)), ((), ())),
                                preferred_element_type=f32)          # [1, N_e]
        s = (jnp.dot(z.astype(bf16), a_inc, preferred_element_type=f32)
             + rel_score[j:j + 1, :])                                # [1, E]
        s = jnp.where(s >= 0.0, s, 0.01 * s)                         # leaky_relu (f32)

        # segment softmax: per-node max is an XLU lane reduction; gathered back
        # to edges through the one-hot on the MXU (exact selection).
        m_node = jnp.max(jnp.where(inc, s, neg), axis=1,
                         keepdims=True)                              # [N_e, 1]
        m_edge = jax.lax.dot_general(m_node.astype(bf16), a_inc,
                                     (((0,), (0,)), ((), ())),
                                     preferred_element_type=f32)     # [1, E]
        ex = jnp.exp(s - m_edge)                                     # [1, E] (EUP)

        # merged denominator + aggregation: fold exp weights into the incidence
        # operand; the denominator is its row-sum (XLU), one bf16 MXU matmul
        # gives the un-normalized per-node aggregation — no per-edge divide.
        a_w = a_inc * ex.astype(bf16)                                # [N_e, E] bf16
        den = jnp.sum(a_w.astype(f32), axis=1, keepdims=True)        # [N_e, 1]
        er_g = er_g_all[:, j * HP:(j + 1) * HP].astype(bf16)          # [E, HP]
        agg = jnp.dot(a_w, er_g, preferred_element_type=f32)          # [N_e, HP]
        contrib = jnp.maximum(
            agg * pl.reciprocal(den + eps, approx=True), 0.0)         # relu(agg/den)
        return xe + contrib

    xe = x_e_ref[...]                                                # [N_e, HP]
    xe = stage(xe, 0, 0)    # head  (w_r , a_h , a_r1)
    xe = stage(xe, 1, 1)    # tail  (w_r1, a_t , a_r2)
    xe = stage(xe, 2, 0)    # head  (w_r2, a_h1, a_r3)
    out_ref[...] = xe


# ------------------------------- wrapper -------------------------------------
@jax.jit
def gatr_to_e(x_e, x_r, edge_index, rel_size, params):
    N_e, H = x_e.shape
    E, D = x_r.shape
    HP = -(-H // 128) * 128                    # pad features to full lane tiles
    f32 = jnp.float32

    def pad_h(a, axis):
        pads = [(0, 0)] * a.ndim
        pads[axis] = (0, HP - H)
        return jnp.pad(a, pads)

    # stage order: (head, W_r, a_h, a_r1), (tail, W_r1, a_t, a_r2), (head, W_r2, a_h1, a_r3)
    Ws = (params["W_r"], params["W_r1"], params["W_r2"])
    bs = (params["b_r"], params["b_r1"], params["b_r2"])
    a_nodes = (params["a_h"], params["a_t"], params["a_h1"])
    a_rels = (params["a_r1"], params["a_r2"], params["a_r3"])

    # packed / pre-folded params (static param packing, not runtime hoisting).
    w_all = jnp.concatenate([pad_h(W, 1) for W in Ws], axis=1)             # [D, 3*HP]
    b_row = jnp.concatenate([pad_h(b, 1) for b in bs], axis=1)             # [1, 3*HP]
    a_node_all = jnp.concatenate([pad_h(a, 0).T for a in a_nodes], axis=0)  # [3, HP]
    ws_all = jnp.concatenate([(W @ a).T for W, a in zip(Ws, a_rels)], axis=0)  # [3, D]
    rel_bias = jnp.concatenate([b @ a for b, a in zip(bs, a_rels)], axis=0)    # [3, 1]

    x_e_pad = pad_h(x_e, 1)                                                # [N_e, HP]

    args = (x_e_pad, x_r, edge_index.astype(jnp.int32),
            w_all, b_row, ws_all, rel_bias, a_node_all)

    out_pad = pl.pallas_call(
        gatr_to_e_kernel,
        out_shape=jax.ShapeDtypeStruct((N_e, HP), f32),
        grid_spec=pltpu.PrefetchScalarGridSpec(
            num_scalar_prefetch=1,                         # rel_size -> SMEM
            grid=(1,),
            in_specs=[pl.BlockSpec(a.shape, lambda i, rs: (0, 0)) for a in args],
            out_specs=pl.BlockSpec((N_e, HP), lambda i, rs: (0, 0)),
            scratch_shapes=[pltpu.VMEM((E, D), f32)],
        ),
        # inputs are counted including the scalar-prefetch operand -> x_e_pad is 1
        input_output_aliases={1: 0},
        compiler_params=pltpu.CompilerParams(
            dimension_semantics=("arbitrary",),
            vmem_limit_bytes=32 * 1024 * 1024,
        ),
    )(rel_size.astype(jnp.int32), *args)
    return out_pad[:, :H]


# --------------------------- pure-JAX reference ------------------------------
def reference(x_e, x_r, edge_index, rel_size, params):
    idx_h, idx_t = edge_index[0], edge_index[1]
    N_e = x_e.shape[0]

    def stage(xe, idx, W, b_row, a_node, a_rel):
        e_nodes = xe[idx]
        e_r = x_r @ W + b_row
        s = (e_nodes @ a_node)[:, 0] + (e_r @ a_rel)[:, 0]
        s = jnp.where(s >= 0.0, s, 0.01 * s)
        m = jnp.full((N_e,), -jnp.inf, jnp.float32).at[idx].max(s)
        ex = jnp.exp(s - m[idx])
        den = jnp.zeros((N_e,), jnp.float32).at[idx].add(ex)
        alpha = ex / (den[idx] + 1e-16)
        agg = jnp.zeros_like(xe).at[idx].add(alpha[:, None] * e_r[rel_size])
        return xe + jnp.maximum(agg, 0.0)

    xe = stage(x_e, idx_h, params["W_r"], params["b_r"], params["a_h"], params["a_r1"])
    xe = stage(xe, idx_t, params["W_r1"], params["b_r1"], params["a_t"], params["a_r2"])
    xe = stage(xe, idx_h, params["W_r2"], params["b_r2"], params["a_h1"], params["a_r3"])
    return xe


# --------------------------------- main ---------------------------------------
if __name__ == "__main__":
    # small, shape-consistent example:
    e_hidden, r_hidden, t_hidden = 32, 16, 8
    D_in = r_hidden + 2 * t_hidden          # 32
    N_e, E = 16, 24                         # entities, edges (N_r == E)

    key = jax.random.PRNGKey(0)
    keys = jax.random.split(key, 16)

    x_e = jax.random.normal(keys[0], (N_e, e_hidden), jnp.float32)
    x_r = jax.random.normal(keys[1], (E, D_in), jnp.float32)
    edge_index = jax.random.randint(keys[2], (2, E), 0, N_e, jnp.int32)
    rel_size = jax.random.randint(keys[3], (E,), 0, E, jnp.int32)

    def linear(k, fan_in, fan_out):
        kw, kb = jax.random.split(k)
        w = jax.random.normal(kw, (fan_in, fan_out), jnp.float32) * 0.1
        b = jax.random.normal(kb, (1, fan_out), jnp.float32) * 0.1
        return w, b

    W_r, b_r = linear(keys[4], D_in, e_hidden)
    W_r1, b_r1 = linear(keys[5], D_in, e_hidden)
    W_r2, b_r2 = linear(keys[6], D_in, e_hidden)
    params = {
        "W_r": W_r, "b_r": b_r,
        "W_r1": W_r1, "b_r1": b_r1,
        "W_r2": W_r2, "b_r2": b_r2,
        "a_h": jax.random.normal(keys[7], (e_hidden, 1), jnp.float32) * 0.1,
        "a_h1": jax.random.normal(keys[8], (e_hidden, 1), jnp.float32) * 0.1,
        "a_t": jax.random.normal(keys[9], (e_hidden, 1), jnp.float32) * 0.1,
        "a_r1": jax.random.normal(keys[10], (e_hidden, 1), jnp.float32) * 0.1,
        "a_r2": jax.random.normal(keys[11], (e_hidden, 1), jnp.float32) * 0.1,
        "a_r3": jax.random.normal(keys[12], (e_hidden, 1), jnp.float32) * 0.1,
    }

    out = jax.block_until_ready(gatr_to_e(x_e, x_r, edge_index, rel_size, params))
    ref = jax.block_until_ready(reference(x_e, x_r, edge_index, rel_size, params))

    assert out.shape == (N_e, e_hidden)
    # bf16 MXU operands on the one-hot gathers/scatter + approx reciprocal in
    # the softmax normalization -> looser tolerance than the all-f32 version.
    assert jnp.allclose(out, ref, atol=3e-2, rtol=3e-2), "mismatch vs reference"

    print("KERNEL_OK")
</pallas_src>

<mosaic_0001>
module attributes {stable_mosaic.version = 11 : i64} {
  func.func @gatr_to_e_kernel(%arg0: i32, %arg1: memref<24xi32, #tpu.memory_space<smem>>, %arg2: memref<16x128xf32, #tpu.memory_space<vmem>>, %arg3: memref<24x32xf32, #tpu.memory_space<vmem>>, %arg4: memref<2x24xi32, #tpu.memory_space<vmem>>, %arg5: memref<32x384xf32, #tpu.memory_space<vmem>>, %arg6: memref<1x384xf32, #tpu.memory_space<vmem>>, %arg7: memref<3x32xf32, #tpu.memory_space<vmem>>, %arg8: memref<3x1xf32, #tpu.memory_space<vmem>>, %arg9: memref<3x128xf32, #tpu.memory_space<vmem>>, %arg10: memref<16x128xf32, #tpu.memory_space<vmem>>, %arg11: memref<24x32xf32, #tpu.memory_space<vmem>>) attributes {dimension_semantics = [#tpu.dimension_semantics<arbitrary>], iteration_bounds = array<i64: 1>, scalar_prefetch = 1 : i64, scratch_operands = 1 : i64, tpu.core_type = #tpu.core_type<tc>, window_params = [{pipeline_mode = #tpu.pipeline_mode<synchronous>, transform_indices = @transform_0, window_bounds = array<i64: 16, 128>}, {pipeline_mode = #tpu.pipeline_mode<synchronous>, transform_indices = @transform_1, window_bounds = array<i64: 24, 32>}, {pipeline_mode = #tpu.pipeline_mode<synchronous>, transform_indices = @transform_2, window_bounds = array<i64: 2, 24>}, {pipeline_mode = #tpu.pipeline_mode<synchronous>, transform_indices = @transform_3, window_bounds = array<i64: 32, 384>}, {pipeline_mode = #tpu.pipeline_mode<synchronous>, transform_indices = @transform_4, window_bounds = array<i64: 1, 384>}, {pipeline_mode = #tpu.pipeline_mode<synchronous>, transform_indices = @transform_5, window_bounds = array<i64: 3, 32>}, {pipeline_mode = #tpu.pipeline_mode<synchronous>, transform_indices = @transform_6, window_bounds = array<i64: 3, 1>}, {pipeline_mode = #tpu.pipeline_mode<synchronous>, transform_indices = @transform_7, window_bounds = array<i64: 3, 128>}, {pipeline_mode = #tpu.pipeline_mode<synchronous>, transform_indices = @transform_8, window_bounds = array<i64: 16, 128>}]} {
    %c0 = arith.constant 0 : index
    %0 = memref.load %arg1[%c0] : memref<24xi32, #tpu.memory_space<smem>>
    %1 = arith.index_cast %0 : i32 to index
    %c0_0 = arith.constant 0 : index
    %2 = vector.load %arg3[%1, %c0_0] : memref<24x32xf32, #tpu.memory_space<vmem>>, vector<1x32xf32>
    %c0_1 = arith.constant 0 : index
    %c0_2 = arith.constant 0 : index
    %3 = vector.load %arg11[%c0_1, %c0_2] : memref<24x32xf32, #tpu.memory_space<vmem>>, vector<1x32xf32>
    tpu.vector_store %arg11[%c0_1, %c0_2], %2 {strides = array<i32>} : memref<24x32xf32, #tpu.memory_space<vmem>>, vector<1x32xf32>,
    %c1 = arith.constant 1 : index
    %4 = memref.load %arg1[%c1] : memref<24xi32, #tpu.memory_space<smem>>
    %5 = arith.index_cast %4 : i32 to index
    %c0_3 = arith.constant 0 : index
    %6 = vector.load %arg3[%5, %c0_3] : memref<24x32xf32, #tpu.memory_space<vmem>>, vector<1x32xf32>
    %c1_4 = arith.constant 1 : index
    %c0_5 = arith.constant 0 : index
    %7 = vector.load %arg11[%c1_4, %c0_5] : memref<24x32xf32, #tpu.memory_space<vmem>>, vector<1x32xf32>
    tpu.vector_store %arg11[%c1_4, %c0_5], %6 {strides = array<i32>} : memref<24x32xf32, #tpu.memory_space<vmem>>, vector<1x32xf32>,
    %c2 = arith.constant 2 : index
    %8 = memref.load %arg1[%c2] : memref<24xi32, #tpu.memory_space<smem>>
    %9 = arith.index_cast %8 : i32 to index
    %c0_6 = arith.constant 0 : index
    %10 = vector.load %arg3[%9, %c0_6] : memref<24x32xf32, #tpu.memory_space<vmem>>, vector<1x32xf32>
    %c2_7 = arith.constant 2 : index
    %c0_8 = arith.constant 0 : index
    %11 = vector.load %arg11[%c2_7, %c0_8] : memref<24x32xf32, #tpu.memory_space<vmem>>, vector<1x32xf32>
    tpu.vector_store %arg11[%c2_7, %c0_8], %10 {strides = array<i32>} : memref<24x32xf32, #tpu.memory_space<vmem>>, vector<1x32xf32>,
    %c3 = arith.constant 3 : index
    %12 = memref.load %arg1[%c3] : memref<24xi32, #tpu.memory_space<smem>>
    %13 = arith.index_cast %12 : i32 to index
    %c0_9 = arith.constant 0 : index
    %14 = vector.load %arg3[%13, %c0_9] : memref<24x32xf32, #tpu.memory_space<vmem>>, vector<1x32xf32>
    %c3_10 = arith.constant 3 : index
    %c0_11 = arith.constant 0 : index
    %15 = vector.load %arg11[%c3_10, %c0_11] : memref<24x32xf32, #tpu.memory_space<vmem>>, vector<1x32xf32>
    tpu.vector_store %arg11[%c3_10, %c0_11], %14 {strides = array<i32>} : memref<24x32xf32, #tpu.memory_space<vmem>>, vector<1x32xf32>,
    %c4 = arith.constant 4 : index
    %16 = memref.load %arg1[%c4] : memref<24xi32, #tpu.memory_space<smem>>
    %17 = arith.index_cast %16 : i32 to index
    %c0_12 = arith.constant 0 : index
    %18 = vector.load %arg3[%17, %c0_12] : memref<24x32xf32, #tpu.memory_space<vmem>>, vector<1x32xf32>
    %c4_13 = arith.constant 4 : index
    %c0_14 = arith.constant 0 : index
    %19 = vector.load %arg11[%c4_13, %c0_14] : memref<24x32xf32, #tpu.memory_space<vmem>>, vector<1x32xf32>
    tpu.vector_store %arg11[%c4_13, %c0_14], %18 {strides = array<i32>} : memref<24x32xf32, #tpu.memory_space<vmem>>, vector<1x32xf32>,
    %c5 = arith.constant 5 : index
    %20 = memref.load %arg1[%c5] : memref<24xi32, #tpu.memory_space<smem>>
    %21 = arith.index_cast %20 : i32 to index
    %c0_15 = arith.constant 0 : index
    %22 = vector.load %arg3[%21, %c0_15] : memref<24x32xf32, #tpu.memory_space<vmem>>, vector<1x32xf32>
    %c5_16 = arith.constant 5 : index
    %c0_17 = arith.constant 0 : index
    %23 = vector.load %arg11[%c5_16, %c0_17] : memref<24x32xf32, #tpu.memory_space<vmem>>, vector<1x32xf32>
    tpu.vector_store %arg11[%c5_16, %c0_17], %22 {strides = array<i32>} : memref<24x32xf32, #tpu.memory_space<vmem>>, vector<1x32xf32>,
    %c6 = arith.constant 6 : index
    %24 = memref.load %arg1[%c6] : memref<24xi32, #tpu.memory_space<smem>>
    %25 = arith.index_cast %24 : i32 to index
    %c0_18 = arith.constant 0 : index
    %26 = vector.load %arg3[%25, %c0_18] : memref<24x32xf32, #tpu.memory_space<vmem>>, vector<1x32xf32>
    %c6_19 = arith.constant 6 : index
    %c0_20 = arith.constant 0 : index
    %27 = vector.load %arg11[%c6_19, %c0_20] : memref<24x32xf32, #tpu.memory_space<vmem>>, vector<1x32xf32>
    tpu.vector_store %arg11[%c6_19, %c0_20], %26 {strides = array<i32>} : memref<24x32xf32, #tpu.memory_space<vmem>>, vector<1x32xf32>,
    %c7 = arith.constant 7 : index
    %28 = memref.load %arg1[%c7] : memref<24xi32, #tpu.memory_space<smem>>
    %29 = arith.index_cast %28 : i32 to index
    %c0_21 = arith.constant 0 : index
    %30 = vector.load %arg3[%29, %c0_21] : memref<24x32xf32, #tpu.memory_space<vmem>>, vector<1x32xf32>
    %c7_22 = arith.constant 7 : index
    %c0_23 = arith.constant 0 : index
    %31 = vector.load %arg11[%c7_22, %c0_23] : memref<24x32xf32, #tpu.memory_space<vmem>>, vector<1x32xf32>
    tpu.vector_store %arg11[%c7_22, %c0_23], %30 {strides = array<i32>} : memref<24x32xf32, #tpu.memory_space<vmem>>, vector<1x32xf32>,
    %c8 = arith.constant 8 : index
    %32 = memref.load %arg1[%c8] : memref<24xi32, #tpu.memory_space<smem>>
    %33 = arith.index_cast %32 : i32 to index
    %c0_24 = arith.constant 0 : index
    %34 = vector.load %arg3[%33, %c0_24] : memref<24x32xf32, #tpu.memory_space<vmem>>, vector<1x32xf32>
    %c8_25 = arith.constant 8 : index
    %c0_26 = arith.constant 0 : index
    %35 = vector.load %arg11[%c8_25, %c0_26] : memref<24x32xf32, #tpu.memory_space<vmem>>, vector<1x32xf32>
    tpu.vector_store %arg11[%c8_25, %c0_26], %34 {strides = array<i32>} : memref<24x32xf32, #tpu.memory_space<vmem>>, vector<1x32xf32>,
    %c9 = arith.constant 9 : index
    %36 = memref.load %arg1[%c9] : memref<24xi32, #tpu.memory_space<smem>>
    %37 = arith.index_cast %36 : i32 to index
    %c0_27 = arith.constant 0 : index
    %38 = vector.load %arg3[%37, %c0_27] : memref<24x32xf32, #tpu.memory_space<vmem>>, vector<1x32xf32>
    %c9_28 = arith.constant 9 : index
    %c0_29 = arith.constant 0 : index
    %39 = vector.load %arg11[%c9_28, %c0_29] : memref<24x32xf32, #tpu.memory_space<vmem>>, vector<1x32xf32>
    tpu.vector_store %arg11[%c9_28, %c0_29], %38 {strides = array<i32>} : memref<24x32xf32, #tpu.memory_space<vmem>>, vector<1x32xf32>,
    %c10 = arith.constant 10 : index
    %40 = memref.load %arg1[%c10] : memref<24xi32, #tpu.memory_space<smem>>
    %41 = arith.index_cast %40 : i32 to index
    %c0_30 = arith.constant 0 : index
    %42 = vector.load %arg3[%41, %c0_30] : memref<24x32xf32, #tpu.memory_space<vmem>>, vector<1x32xf32>
    %c10_31 = arith.constant 10 : index
    %c0_32 = arith.constant 0 : index
    %43 = vector.load %arg11[%c10_31, %c0_32] : memref<24x32xf32, #tpu.memory_space<vmem>>, vector<1x32xf32>
    tpu.vector_store %arg11[%c10_31, %c0_32], %42 {strides = array<i32>} : memref<24x32xf32, #tpu.memory_space<vmem>>, vector<1x32xf32>,
    %c11 = arith.constant 11 : index
    %44 = memref.load %arg1[%c11] : memref<24xi32, #tpu.memory_space<smem>>
    %45 = arith.index_cast %44 : i32 to index
    %c0_33 = arith.constant 0 : index
    %46 = vector.load %arg3[%45, %c0_33] : memref<24x32xf32, #tpu.memory_space<vmem>>, vector<1x32xf32>
    %c11_34 = arith.constant 11 : index
    %c0_35 = arith.constant 0 : index
    %47 = vector.load %arg11[%c11_34, %c0_35] : memref<24x32xf32, #tpu.memory_space<vmem>>, vector<1x32xf32>
    tpu.vector_store %arg11[%c11_34, %c0_35], %46 {strides = array<i32>} : memref<24x32xf32, #tpu.memory_space<vmem>>, vector<1x32xf32>,
    %c12 = arith.constant 12 : index
    %48 = memref.load %arg1[%c12] : memref<24xi32, #tpu.memory_space<smem>>
    %49 = arith.index_cast %48 : i32 to index
    %c0_36 = arith.constant 0 : index
    %50 = vector.load %arg3[%49, %c0_36] : memref<24x32xf32, #tpu.memory_space<vmem>>, vector<1x32xf32>
    %c12_37 = arith.constant 12 : index
    %c0_38 = arith.constant 0 : index
    %51 = vector.load %arg11[%c12_37, %c0_38] : memref<24x32xf32, #tpu.memory_space<vmem>>, vector<1x32xf32>
    tpu.vector_store %arg11[%c12_37, %c0_38], %50 {strides = array<i32>} : memref<24x32xf32, #tpu.memory_space<vmem>>, vector<1x32xf32>,
    %c13 = arith.constant 13 : index
    %52 = memref.load %arg1[%c13] : memref<24xi32, #tpu.memory_space<smem>>
    %53 = arith.index_cast %52 : i32 to index
    %c0_39 = arith.constant 0 : index
    %54 = vector.load %arg3[%53, %c0_39] : memref<24x32xf32, #tpu.memory_space<vmem>>, vector<1x32xf32>
    %c13_40 = arith.constant 13 : index
    %c0_41 = arith.constant 0 : index
    %55 = vector.load %arg11[%c13_40, %c0_41] : memref<24x32xf32, #tpu.memory_space<vmem>>, vector<1x32xf32>
    tpu.vector_store %arg11[%c13_40, %c0_41], %54 {strides = array<i32>} : memref<24x32xf32, #tpu.memory_space<vmem>>, vector<1x32xf32>,
    %c14 = arith.constant 14 : index
    %56 = memref.load %arg1[%c14] : memref<24xi32, #tpu.memory_space<smem>>
    %57 = arith.index_cast %56 : i32 to index
    %c0_42 = arith.constant 0 : index
    %58 = vector.load %arg3[%57, %c0_42] : memref<24x32xf32, #tpu.memory_space<vmem>>, vector<1x32xf32>
    %c14_43 = arith.constant 14 : index
    %c0_44 = arith.constant 0 : index
    %59 = vector.load %arg11[%c14_43, %c0_44] : memref<24x32xf32, #tpu.memory_space<vmem>>, vector<1x32xf32>
    tpu.vector_store %arg11[%c14_43, %c0_44], %58 {strides = array<i32>} : memref<24x32xf32, #tpu.memory_space<vmem>>, vector<1x32xf32>,
    %c15 = arith.constant 15 : index
    %60 = memref.load %arg1[%c15] : memref<24xi32, #tpu.memory_space<smem>>
    %61 = arith.index_cast %60 : i32 to index
    %c0_45 = arith.constant 0 : index
    %62 = vector.load %arg3[%61, %c0_45] : memref<24x32xf32, #tpu.memory_space<vmem>>, vector<1x32xf32>
    %c15_46 = arith.constant 15 : index
    %c0_47 = arith.constant 0 : index
    %63 = vector.load %arg11[%c15_46, %c0_47] : memref<24x32xf32, #tpu.memory_space<vmem>>, vector<1x32xf32>
    tpu.vector_store %arg11[%c15_46, %c0_47], %62 {strides = array<i32>} : memref<24x32xf32, #tpu.memory_space<vmem>>, vector<1x32xf32>,
    %c16 = arith.constant 16 : index
    %64 = memref.load %arg1[%c16] : memref<24xi32, #tpu.memory_space<smem>>
    %65 = arith.index_cast %64 : i32 to index
    %c0_48 = arith.constant 0 : index
    %66 = vector.load %arg3[%65, %c0_48] : memref<24x32xf32, #tpu.memory_space<vmem>>, vector<1x32xf32>
    %c16_49 = arith.constant 16 : index
    %c0_50 = arith.constant 0 : index
    %67 = vector.load %arg11[%c16_49, %c0_50] : memref<24x32xf32, #tpu.memory_space<vmem>>, vector<1x32xf32>
    tpu.vector_store %arg11[%c16_49, %c0_50], %66 {strides = array<i32>} : memref<24x32xf32, #tpu.memory_space<vmem>>, vector<1x32xf32>,
    %c17 = arith.constant 17 : index
    %68 = memref.load %arg1[%c17] : memref<24xi32, #tpu.memory_space<smem>>
    %69 = arith.index_cast %68 : i32 to index
    %c0_51 = arith.constant 0 : index
    %70 = vector.load %arg3[%69, %c0_51] : memref<24x32xf32, #tpu.memory_space<vmem>>, vector<1x32xf32>
    %c17_52 = arith.constant 17 : index
    %c0_53 = arith.constant 0 : index
    %71 = vector.load %arg11[%c17_52, %c0_53] : memref<24x32xf32, #tpu.memory_space<vmem>>, vector<1x32xf32>
    tpu.vector_store %arg11[%c17_52, %c0_53], %70 {strides = array<i32>} : memref<24x32xf32, #tpu.memory_space<vmem>>, vector<1x32xf32>,
    %c18 = arith.constant 18 : index
    %72 = memref.load %arg1[%c18] : memref<24xi32, #tpu.memory_space<smem>>
    %73 = arith.index_cast %72 : i32 to index
    %c0_54 = arith.constant 0 : index
    %74 = vector.load %arg3[%73, %c0_54] : memref<24x32xf32, #tpu.memory_space<vmem>>, vector<1x32xf32>
    %c18_55 = arith.constant 18 : index
    %c0_56 = arith.constant 0 : index
    %75 = vector.load %arg11[%c18_55, %c0_56] : memref<24x32xf32, #tpu.memory_space<vmem>>, vector<1x32xf32>
    tpu.vector_store %arg11[%c18_55, %c0_56], %74 {strides = array<i32>} : memref<24x32xf32, #tpu.memory_space<vmem>>, vector<1x32xf32>,
    %c19 = arith.constant 19 : index
    %76 = memref.load %arg1[%c19] : memref<24xi32, #tpu.memory_space<smem>>
    %77 = arith.index_cast %76 : i32 to index
    %c0_57 = arith.constant 0 : index
    %78 = vector.load %arg3[%77, %c0_57] : memref<24x32xf32, #tpu.memory_space<vmem>>, vector<1x32xf32>
    %c19_58 = arith.constant 19 : index
    %c0_59 = arith.constant 0 : index
    %79 = vector.load %arg11[%c19_58, %c0_59] : memref<24x32xf32, #tpu.memory_space<vmem>>, vector<1x32xf32>
    tpu.vector_store %arg11[%c19_58, %c0_59], %78 {strides = array<i32>} : memref<24x32xf32, #tpu.memory_space<vmem>>, vector<1x32xf32>,
    %c20 = arith.constant 20 : index
    %80 = memref.load %arg1[%c20] : memref<24xi32, #tpu.memory_space<smem>>
    %81 = arith.index_cast %80 : i32 to index
    %c0_60 = arith.constant 0 : index
    %82 = vector.load %arg3[%81, %c0_60] : memref<24x32xf32, #tpu.memory_space<vmem>>, vector<1x32xf32>
    %c20_61 = arith.constant 20 : index
    %c0_62 = arith.constant 0 : index
    %83 = vector.load %arg11[%c20_61, %c0_62] : memref<24x32xf32, #tpu.memory_space<vmem>>, vector<1x32xf32>
    tpu.vector_store %arg11[%c20_61, %c0_62], %82 {strides = array<i32>} : memref<24x32xf32, #tpu.memory_space<vmem>>, vector<1x32xf32>,
    %c21 = arith.constant 21 : index
    %84 = memref.load %arg1[%c21] : memref<24xi32, #tpu.memory_space<smem>>
    %85 = arith.index_cast %84 : i32 to index
    %c0_63 = arith.constant 0 : index
    %86 = vector.load %arg3[%85, %c0_63] : memref<24x32xf32, #tpu.memory_space<vmem>>, vector<1x32xf32>
    %c21_64 = arith.constant 21 : index
    %c0_65 = arith.constant 0 : index
    %87 = vector.load %arg11[%c21_64, %c0_65] : memref<24x32xf32, #tpu.memory_space<vmem>>, vector<1x32xf32>
    tpu.vector_store %arg11[%c21_64, %c0_65], %86 {strides = array<i32>} : memref<24x32xf32, #tpu.memory_space<vmem>>, vector<1x32xf32>,
    %c22 = arith.constant 22 : index
    %88 = memref.load %arg1[%c22] : memref<24xi32, #tpu.memory_space<smem>>
    %89 = arith.index_cast %88 : i32 to index
    %c0_66 = arith.constant 0 : index
    %90 = vector.load %arg3[%89, %c0_66] : memref<24x32xf32, #tpu.memory_space<vmem>>, vector<1x32xf32>
    %c22_67 = arith.constant 22 : index
    %c0_68 = arith.constant 0 : index
    %91 = vector.load %arg11[%c22_67, %c0_68] : memref<24x32xf32, #tpu.memory_space<vmem>>, vector<1x32xf32>
    tpu.vector_store %arg11[%c22_67, %c0_68], %90 {strides = array<i32>} : memref<24x32xf32, #tpu.memory_space<vmem>>, vector<1x32xf32>,
    %c23 = arith.constant 23 : index
    %92 = memref.load %arg1[%c23] : memref<24xi32, #tpu.memory_space<smem>>
    %93 = arith.index_cast %92 : i32 to index
    %c0_69 = arith.constant 0 : index
    %94 = vector.load %arg3[%93, %c0_69] : memref<24x32xf32, #tpu.memory_space<vmem>>, vector<1x32xf32>
    %c23_70 = arith.constant 23 : index
    %c0_71 = arith.constant 0 : index
    %95 = vector.load %arg11[%c23_70, %c0_71] : memref<24x32xf32, #tpu.memory_space<vmem>>, vector<1x32xf32>
    tpu.vector_store %arg11[%c23_70, %c0_71], %94 {strides = array<i32>} : memref<24x32xf32, #tpu.memory_space<vmem>>, vector<1x32xf32>,
    %c0_72 = arith.constant 0 : index
    %c0_73 = arith.constant 0 : index
    %96 = vector.load %arg3[%c0_72, %c0_73] : memref<24x32xf32, #tpu.memory_space<vmem>>, vector<24x32xf32>
    %c0_74 = arith.constant 0 : index
    %c0_75 = arith.constant 0 : index
    %97 = vector.load %arg11[%c0_74, %c0_75] : memref<24x32xf32, #tpu.memory_space<vmem>>, vector<24x32xf32>
    %c0_76 = arith.constant 0 : index
    %c0_77 = arith.constant 0 : index
    %98 = vector.load %arg5[%c0_76, %c0_77] : memref<32x384xf32, #tpu.memory_space<vmem>>, vector<32x384xf32>
    %cst = arith.constant dense<0.000000e+00> : vector<24x384xf32>
    %99 = tpu.matmul %97, %98, %cst {dimension_numbers = #tpu.dot_dimension_numbers<[1], [0], [0], [1], [0, 0, 1, 1], [], []>} : vector<24x32xf32>, vector<32x384xf32>, vector<24x384xf32> -> vector<24x384xf32>
    %c0_78 = arith.constant 0 : index
    %c0_79 = arith.constant 0 : index
    %100 = vector.load %arg6[%c0_78, %c0_79] : memref<1x384xf32, #tpu.memory_space<vmem>>, vector<1x384xf32>
    %101 = vector.broadcast %100 : vector<1x384xf32> to vector<24x384xf32>
    %102 = arith.addf %99, %101 : vector<24x384xf32>
    %c0_80 = arith.constant 0 : index
    %c0_81 = arith.constant 0 : index
    %103 = vector.load %arg7[%c0_80, %c0_81] : memref<3x32xf32, #tpu.memory_space<vmem>>, vector<3x32xf32>
    %cst_82 = arith.constant dense<0.000000e+00> : vector<3x24xf32>
    %104 = tpu.matmul %103, %96, %cst_82 {dimension_numbers = #tpu.dot_dimension_numbers<[1], [1], [0], [0], [0, 0, 1, 0], [], []>} : vector<3x32xf32>, vector<24x32xf32>, vector<3x24xf32> -> vector<3x24xf32>
    %c0_83 = arith.constant 0 : index
    %c0_84 = arith.constant 0 : index
    %105 = vector.load %arg8[%c0_83, %c0_84] : memref<3x1xf32, #tpu.memory_space<vmem>>, vector<3x1xf32>
    %106 = vector.broadcast %105 : vector<3x1xf32> to vector<3x24xf32>
    %107 = arith.addf %104, %106 : vector<3x24xf32>
    %c0_85 = arith.constant 0 : index
    %c0_86 = arith.constant 0 : index
    %108 = vector.load %arg9[%c0_85, %c0_86] : memref<3x128xf32, #tpu.memory_space<vmem>>, vector<3x128xf32>
    %c0_87 = arith.constant 0 : index
    %c0_88 = arith.constant 0 : index
    %109 = vector.load %arg4[%c0_87, %c0_88] : memref<2x24xi32, #tpu.memory_space<vmem>>, vector<2x24xi32>
    %110 = tpu.iota {dimensions = array<i32: 0>} : vector<16x24xi32>
    %c0_89 = arith.constant 0 : index
    %c0_90 = arith.constant 0 : index
    %111 = vector.load %arg2[%c0_89, %c0_90] : memref<16x128xf32, #tpu.memory_space<vmem>>, vector<16x128xf32>
    %112 = vector.extract_strided_slice %109 {offsets = [0, 0], sizes = [1, 24], strides = [1, 1]} : vector<2x24xi32> to vector<1x24xi32>
    %113 = vector.broadcast %112 : vector<1x24xi32> to vector<16x24xi32>
    %114 = arith.cmpi eq, %110, %113 : vector<16x24xi32>
    %115 = arith.extui %114 : vector<16x24xi1> to vector<16x24xi32>
    %116 = arith.sitofp %115 : vector<16x24xi32> to vector<16x24xf32>
    %117 = arith.truncf %116 : vector<16x24xf32> to vector<16x24xbf16>
    %118 = vector.extract_strided_slice %108 {offsets = [0, 0], sizes = [1, 128], strides = [1, 1]} : vector<3x128xf32> to vector<1x128xf32>
    %cst_91 = arith.constant dense<0.000000e+00> : vector<1x16xf32>
    %119 = tpu.matmul %118, %111, %cst_91 {dimension_numbers = #tpu.dot_dimension_numbers<[1], [1], [0], [0], [0, 0, 1, 0], [], []>} : vector<1x128xf32>, vector<16x128xf32>, vector<1x16xf32> -> vector<1x16xf32>
    %120 = arith.truncf %119 : vector<1x16xf32> to vector<1x16xbf16>
    %cst_92 = arith.constant dense<0.000000e+00> : vector<1x24xf32>
    %121 = tpu.matmul %120, %117, %cst_92 {dimension_numbers = #tpu.dot_dimension_numbers<[1], [0], [0], [1], [0, 0, 1, 1], [], []>} : vector<1x16xbf16>, vector<16x24xbf16>, vector<1x24xf32> -> vector<1x24xf32>
    %122 = vector.extract_strided_slice %107 {offsets = [0, 0], sizes = [1, 24], strides = [1, 1]} : vector<3x24xf32> to vector<1x24xf32>
    %123 = arith.addf %121, %122 : vector<1x24xf32>
    %cst_93 = arith.constant 0.000000e+00 : f32
    %124 = vector.broadcast %cst_93 : f32 to vector<1x24xf32>
    %125 = arith.cmpf oge, %123, %124 : vector<1x24xf32>
    %cst_94 = arith.constant 0.00999999977 : f32
    %126 = vector.broadcast %cst_94 : f32 to vector<1x24xf32>
    %127 = arith.mulf %126, %123 : vector<1x24xf32>
    %128 = arith.select %125, %123, %127 : vector<1x24xi1>, vector<1x24xf32>
    %cst_95 = arith.constant -1.000000e+30 : f32
    %129 = vector.shape_cast %128 : vector<1x24xf32> to vector<1x24xf32>
    %130 = vector.broadcast %129 : vector<1x24xf32> to vector<16x24xf32>
    %131 = vector.broadcast %cst_95 : f32 to vector<16x24xf32>
    %132 = arith.select %114, %130, %131 : vector<16x24xi1>, vector<16x24xf32>
    %cst_96 = arith.constant dense<0xFF800000> : vector<16xf32>
    %133 = vector.multi_reduction <maximumf>, %132, %cst_96 [1] : vector<16x24xf32> to vector<16xf32>
    %134 = vector.shape_cast %133 : vector<16xf32> to vector<16x1xf32>
    %135 = arith.truncf %134 : vector<16x1xf32> to vector<16x1xbf16>
    %cst_97 = arith.constant dense<0.000000e+00> : vector<1x24xf32>
    %136 = tpu.matmul %135, %117, %cst_97 {dimension_numbers = #tpu.dot_dimension_numbers<[0], [0], [1], [1], [0, 1, 1, 1], [], []>} : vector<16x1xbf16>, vector<16x24xbf16>, vector<1x24xf32> -> vector<1x24xf32>
    %137 = arith.subf %128, %136 : vector<1x24xf32>
    %138 = math.exp %137 : vector<1x24xf32>
    %139 = arith.truncf %138 : vector<1x24xf32> to vector<1x24xbf16>
    %140 = vector.broadcast %139 : vector<1x24xbf16> to vector<16x24xbf16>
    %141 = arith.mulf %117, %140 : vector<16x24xbf16>
    %142 = arith.extf %141 : vector<16x24xbf16> to vector<16x24xf32>
    %cst_98 = arith.constant dense<0.000000e+00> : vector<16xf32>
    %143 = vector.multi_reduction <add>, %142, %cst_98 [1] : vector<16x24xf32> to vector<16xf32>
    %144 = vector.shape_cast %143 : vector<16xf32> to vector<16x1xf32>
    %145 = vector.extract_strided_slice %102 {offsets = [0, 0], sizes = [24, 128], strides = [1, 1]} : vector<24x384xf32> to vector<24x128xf32>
    %146 = arith.truncf %145 : vector<24x128xf32> to vector<24x128xbf16>
    %cst_99 = arith.constant dense<0.000000e+00> : vector<16x128xf32>
    %147 = tpu.matmul %141, %146, %cst_99 {dimension_numbers = #tpu.dot_dimension_numbers<[1], [0], [0], [1], [0, 0, 1, 1], [], []>} : vector<16x24xbf16>, vector<24x128xbf16>, vector<16x128xf32> -> vector<16x128xf32>
    %cst_100 = arith.constant 1.000000e-16 : f32
    %148 = vector.broadcast %cst_100 : f32 to vector<16x1xf32>
    %149 = arith.addf %144, %148 : vector<16x1xf32>
    %150 = tpu.reciprocal %149 {approx = true} : vector<16x1xf32> -> vector<16x1xf32>
    %151 = vector.broadcast %150 : vector<16x1xf32> to vector<16x128xf32>
    %152 = arith.mulf %147, %151 : vector<16x128xf32>
    %cst_101 = arith.constant 0.000000e+00 : f32
    %153 = vector.broadcast %cst_101 : f32 to vector<16x128xf32>
    %154 = arith.maximumf %152, %153 : vector<16x128xf32>
    %155 = arith.addf %111, %154 : vector<16x128xf32>
    %156 = vector.extract_strided_slice %109 {offsets = [1, 0], sizes = [1, 24], strides = [1, 1]} : vector<2x24xi32> to vector<1x24xi32>
    %157 = vector.broadcast %156 : vector<1x24xi32> to vector<16x24xi32>
    %158 = arith.cmpi eq, %110, %157 : vector<16x24xi32>
    %159 = arith.extui %158 : vector<16x24xi1> to vector<16x24xi32>
    %160 = arith.sitofp %159 : vector<16x24xi32> to vector<16x24xf32>
    %161 = arith.truncf %160 : vector<16x24xf32> to vector<16x24xbf16>
    %162 = vector.extract_strided_slice %108 {offsets = [1, 0], sizes = [1, 128], strides = [1, 1]} : vector<3x128xf32> to vector<1x128xf32>
    %cst_102 = arith.constant dense<0.000000e+00> : vector<1x16xf32>
    %163 = tpu.matmul %162, %155, %cst_102 {dimension_numbers = #tpu.dot_dimension_numbers<[1], [1], [0], [0], [0, 0, 1, 0], [], []>} : vector<1x128xf32>, vector<16x128xf32>, vector<1x16xf32> -> vector<1x16xf32>
    %164 = arith.truncf %163 : vector<1x16xf32> to vector<1x16xbf16>
    %cst_103 = arith.constant dense<0.000000e+00> : vector<1x24xf32>
    %165 = tpu.matmul %164, %161, %cst_103 {dimension_numbers = #tpu.dot_dimension_numbers<[1], [0], [0], [1], [0, 0, 1, 1], [], []>} : vector<1x16xbf16>, vector<16x24xbf16>, vector<1x24xf32> -> vector<1x24xf32>
    %166 = vector.extract_strided_slice %107 {offsets = [1, 0], sizes = [1, 24], strides = [1, 1]} : vector<3x24xf32> to vector<1x24xf32>
    %167 = arith.addf %165, %166 : vector<1x24xf32>
    %cst_104 = arith.constant 0.000000e+00 : f32
    %168 = vector.broadcast %cst_104 : f32 to vector<1x24xf32>
    %169 = arith.cmpf oge, %167, %168 : vector<1x24xf32>
    %cst_105 = arith.constant 0.00999999977 : f32
    %170 = vector.broadcast %cst_105 : f32 to vector<1x24xf32>
    %171 = arith.mulf %170, %167 : vector<1x24xf32>
    %172 = arith.select %169, %167, %171 : vector<1x24xi1>, vector<1x24xf32>
    %cst_106 = arith.constant -1.000000e+30 : f32
    %173 = vector.shape_cast %172 : vector<1x24xf32> to vector<1x24xf32>
    %174 = vector.broadcast %173 : vector<1x24xf32> to vector<16x24xf32>
    %175 = vector.broadcast %cst_106 : f32 to vector<16x24xf32>
    %176 = arith.select %158, %174, %175 : vector<16x24xi1>, vector<16x24xf32>
    %cst_107 = arith.constant dense<0xFF800000> : vector<16xf32>
    %177 = vector.multi_reduction <maximumf>, %176, %cst_107 [1] : vector<16x24xf32> to vector<16xf32>
    %178 = vector.shape_cast %177 : vector<16xf32> to vector<16x1xf32>
    %179 = arith.truncf %178 : vector<16x1xf32> to vector<16x1xbf16>
    %cst_108 = arith.constant dense<0.000000e+00> : vector<1x24xf32>
    %180 = tpu.matmul %179, %161, %cst_108 {dimension_numbers = #tpu.dot_dimension_numbers<[0], [0], [1], [1], [0, 1, 1, 1], [], []>} : vector<16x1xbf16>, vector<16x24xbf16>, vector<1x24xf32> -> vector<1x24xf32>
    %181 = arith.subf %172, %180 : vector<1x24xf32>
    %182 = math.exp %181 : vector<1x24xf32>
    %183 = arith.truncf %182 : vector<1x24xf32> to vector<1x24xbf16>
    %184 = vector.broadcast %183 : vector<1x24xbf16> to vector<16x24xbf16>
    %185 = arith.mulf %161, %184 : vector<16x24xbf16>
    %186 = arith.extf %185 : vector<16x24xbf16> to vector<16x24xf32>
    %cst_109 = arith.constant dense<0.000000e+00> : vector<16xf32>
    %187 = vector.multi_reduction <add>, %186, %cst_109 [1] : vector<16x24xf32> to vector<16xf32>
    %188 = vector.shape_cast %187 : vector<16xf32> to vector<16x1xf32>
    %189 = vector.extract_strided_slice %102 {offsets = [0, 128], sizes = [24, 128], strides = [1, 1]} : vector<24x384xf32> to vector<24x128xf32>
    %190 = arith.truncf %189 : vector<24x128xf32> to vector<24x128xbf16>
    %cst_110 = arith.constant dense<0.000000e+00> : vector<16x128xf32>
    %191 = tpu.matmul %185, %190, %cst_110 {dimension_numbers = #tpu.dot_dimension_numbers<[1], [0], [0], [1], [0, 0, 1, 1], [], []>} : vector<16x24xbf16>, vector<24x128xbf16>, vector<16x128xf32> -> vector<16x128xf32>
    %cst_111 = arith.constant 1.000000e-16 : f32
    %192 = vector.broadcast %cst_111 : f32 to vector<16x1xf32>
    %193 = arith.addf %188, %192 : vector<16x1xf32>
    %194 = tpu.reciprocal %193 {approx = true} : vector<16x1xf32> -> vector<16x1xf32>
    %195 = vector.broadcast %194 : vector<16x1xf32> to vector<16x128xf32>
    %196 = arith.mulf %191, %195 : vector<16x128xf32>
    %cst_112 = arith.constant 0.000000e+00 : f32
    %197 = vector.broadcast %cst_112 : f32 to vector<16x128xf32>
    %198 = arith.maximumf %196, %197 : vector<16x128xf32>
    %199 = arith.addf %155, %198 : vector<16x128xf32>
    %200 = vector.extract_strided_slice %109 {offsets = [0, 0], sizes = [1, 24], strides = [1, 1]} : vector<2x24xi32> to vector<1x24xi32>
    %201 = vector.broadcast %200 : vector<1x24xi32> to vector<16x24xi32>
    %202 = arith.cmpi eq, %110, %201 : vector<16x24xi32>
    %203 = arith.extui %202 : vector<16x24xi1> to vector<16x24xi32>
    %204 = arith.sitofp %203 : vector<16x24xi32> to vector<16x24xf32>
    %205 = arith.truncf %204 : vector<16x24xf32> to vector<16x24xbf16>
    %206 = vector.extract_strided_slice %108 {offsets = [2, 0], sizes = [1, 128], strides = [1, 1]} : vector<3x128xf32> to vector<1x128xf32>
    %cst_113 = arith.constant dense<0.000000e+00> : vector<1x16xf32>
    %207 = tpu.matmul %206, %199, %cst_113 {dimension_numbers = #tpu.dot_dimension_numbers<[1], [1], [0], [0], [0, 0, 1, 0], [], []>} : vector<1x128xf32>, vector<16x128xf32>, vector<1x16xf32> -> vector<1x16xf32>
    %208 = arith.truncf %207 : vector<1x16xf32> to vector<1x16xbf16>
    %cst_114 = arith.constant dense<0.000000e+00> : vector<1x24xf32>
    %209 = tpu.matmul %208, %205, %cst_114 {dimension_numbers = #tpu.dot_dimension_numbers<[1], [0], [0], [1], [0, 0, 1, 1], [], []>} : vector<1x16xbf16>, vector<16x24xbf16>, vector<1x24xf32> -> vector<1x24xf32>
    %210 = vector.extract_strided_slice %107 {offsets = [2, 0], sizes = [1, 24], strides = [1, 1]} : vector<3x24xf32> to vector<1x24xf32>
    %211 = arith.addf %209, %210 : vector<1x24xf32>
    %cst_115 = arith.constant 0.000000e+00 : f32
    %212 = vector.broadcast %cst_115 : f32 to vector<1x24xf32>
    %213 = arith.cmpf oge, %211, %212 : vector<1x24xf32>
    %cst_116 = arith.constant 0.00999999977 : f32
    %214 = vector.broadcast %cst_116 : f32 to vector<1x24xf32>
    %215 = arith.mulf %214, %211 : vector<1x24xf32>
    %216 = arith.select %213, %211, %215 : vector<1x24xi1>, vector<1x24xf32>
    %cst_117 = arith.constant -1.000000e+30 : f32
    %217 = vector.shape_cast %216 : vector<1x24xf32> to vector<1x24xf32>
    %218 = vector.broadcast %217 : vector<1x24xf32> to vector<16x24xf32>
    %219 = vector.broadcast %cst_117 : f32 to vector<16x24xf32>
    %220 = arith.select %202, %218, %219 : vector<16x24xi1>, vector<16x24xf32>
    %cst_118 = arith.constant dense<0xFF800000> : vector<16xf32>
    %221 = vector.multi_reduction <maximumf>, %220, %cst_118 [1] : vector<16x24xf32> to vector<16xf32>
    %222 = vector.shape_cast %221 : vector<16xf32> to vector<16x1xf32>
    %223 = arith.truncf %222 : vector<16x1xf32> to vector<16x1xbf16>
    %cst_119 = arith.constant dense<0.000000e+00> : vector<1x24xf32>
    %224 = tpu.matmul %223, %205, %cst_119 {dimension_numbers = #tpu.dot_dimension_numbers<[0], [0], [1], [1], [0, 1, 1, 1], [], []>} : vector<16x1xbf16>, vector<16x24xbf16>, vector<1x24xf32> -> vector<1x24xf32>
    %225 = arith.subf %216, %224 : vector<1x24xf32>
    %226 = math.exp %225 : vector<1x24xf32>
    %227 = arith.truncf %226 : vector<1x24xf32> to vector<1x24xbf16>
    %228 = vector.broadcast %227 : vector<1x24xbf16> to vector<16x24xbf16>
    %229 = arith.mulf %205, %228 : vector<16x24xbf16>
    %230 = arith.extf %229 : vector<16x24xbf16> to vector<16x24xf32>
    %cst_120 = arith.constant dense<0.000000e+00> : vector<16xf32>
    %231 = vector.multi_reduction <add>, %230, %cst_120 [1] : vector<16x24xf32> to vector<16xf32>
    %232 = vector.shape_cast %231 : vector<16xf32> to vector<16x1xf32>
    %233 = vector.extract_strided_slice %102 {offsets = [0, 256], sizes = [24, 128], strides = [1, 1]} : vector<24x384xf32> to vector<24x128xf32>
    %234 = arith.truncf %233 : vector<24x128xf32> to vector<24x128xbf16>
    %cst_121 = arith.constant dense<0.000000e+00> : vector<16x128xf32>
    %235 = tpu.matmul %229, %234, %cst_121 {dimension_numbers = #tpu.dot_dimension_numbers<[1], [0], [0], [1], [0, 0, 1, 1], [], []>} : vector<16x24xbf16>, vector<24x128xbf16>, vector<16x128xf32> -> vector<16x128xf32>
    %cst_122 = arith.constant 1.000000e-16 : f32
    %236 = vector.broadcast %cst_122 : f32 to vector<16x1xf32>
    %237 = arith.addf %232, %236 : vector<16x1xf32>
    %238 = tpu.reciprocal %237 {approx = true} : vector<16x1xf32> -> vector<16x1xf32>
    %239 = vector.broadcast %238 : vector<16x1xf32> to vector<16x128xf32>
    %240 = arith.mulf %235, %239 : vector<16x128xf32>
    %cst_123 = arith.constant 0.000000e+00 : f32
    %241 = vector.broadcast %cst_123 : f32 to vector<16x128xf32>
    %242 = arith.maximumf %240, %241 : vector<16x128xf32>
    %243 = arith.addf %199, %242 : vector<16x128xf32>
    %c0_124 = arith.constant 0 : index
    %c0_125 = arith.constant 0 : index
    %244 = vector.load %arg10[%c0_124, %c0_125] : memref<16x128xf32, #tpu.memory_space<vmem>>, vector<16x128xf32>
    tpu.vector_store %arg10[%c0_124, %c0_125], %243 {strides = array<i32>} : memref<16x128xf32, #tpu.memory_space<vmem>>, vector<16x128xf32>,
    return
  }
  func.func @transform_0(%arg0: i32, %arg1: memref<24xi32, #tpu.memory_space<smem>>) -> (i32, i32) {
    %c0_i32 = arith.constant 0 : i32
    %c0_i32_0 = arith.constant 0 : i32
    %c0_i32_1 = arith.constant 0 : i32
    return %c0_i32, %c0_i32_0 : i32, i32
  }
  func.func @transform_1(%arg0: i32, %arg1: memref<24xi32, #tpu.memory_space<smem>>) -> (i32, i32) {
    %c0_i32 = arith.constant 0 : i32
    %c0_i32_0 = arith.constant 0 : i32
    %c0_i32_1 = arith.constant 0 : i32
    return %c0_i32, %c0_i32_0 : i32, i32
  }
  func.func @transform_2(%arg0: i32, %arg1: memref<24xi32, #tpu.memory_space<smem>>) -> (i32, i32) {
    %c0_i32 = arith.constant 0 : i32
    %c0_i32_0 = arith.constant 0 : i32
    %c0_i32_1 = arith.constant 0 : i32
    return %c0_i32, %c0_i32_0 : i32, i32
  }
  func.func @transform_3(%arg0: i32, %arg1: memref<24xi32, #tpu.memory_space<smem>>) -> (i32, i32) {
    %c0_i32 = arith.constant 0 : i32
    %c0_i32_0 = arith.constant 0 : i32
    %c0_i32_1 = arith.constant 0 : i32
    return %c0_i32, %c0_i32_0 : i32, i32
  }
  func.func @transform_4(%arg0: i32, %arg1: memref<24xi32, #tpu.memory_space<smem>>) -> (i32, i32) {
    %c0_i32 = arith.constant 0 : i32
    %c0_i32_0 = arith.constant 0 : i32
    %c0_i32_1 = arith.constant 0 : i32
    return %c0_i32, %c0_i32_0 : i32, i32
  }
  func.func @transform_5(%arg0: i32, %arg1: memref<24xi32, #tpu.memory_space<smem>>) -> (i32, i32) {
    %c0_i32 = arith.constant 0 : i32
    %c0_i32_0 = arith.constant 0 : i32
    %c0_i32_1 = arith.constant 0 : i32
    return %c0_i32, %c0_i32_0 : i32, i32
  }
  func.func @transform_6(%arg0: i32, %arg1: memref<24xi32, #tpu.memory_space<smem>>) -> (i32, i32) {
    %c0_i32 = arith.constant 0 : i32
    %c0_i32_0 = arith.constant 0 : i32
    %c0_i32_1 = arith.constant 0 : i32
    return %c0_i32, %c0_i32_0 : i32, i32
  }
  func.func @transform_7(%arg0: i32, %arg1: memref<24xi32, #tpu.memory_space<smem>>) -> (i32, i32) {
    %c0_i32 = arith.constant 0 : i32
    %c0_i32_0 = arith.constant 0 : i32
    %c0_i32_1 = arith.constant 0 : i32
    return %c0_i32, %c0_i32_0 : i32, i32
  }
  func.func @transform_8(%arg0: i32, %arg1: memref<24xi32, #tpu.memory_space<smem>>) -> (i32, i32) {
    %c0_i32 = arith.constant 0 : i32
    %c0_i32_0 = arith.constant 0 : i32
    %c0_i32_1 = arith.constant 0 : i32
    return %c0_i32, %c0_i32_0 : i32, i32
  }
}

</mosaic_0001>

<llo_original>
// kernel: gatr_to_e.1
$region0: #{gatr_to_e.1}
  #allocation0 [shape = 'u32[]', space=smem, size = 0x4, offset = 0x4, fixed_abs, tag = 'smem constant byte address 0x4 - core index']
  #allocation1 [shape = 'u32[144,128]{1,0:T(1,128)}', space=vmem, size = 0x12000, scoped, tag = 'internal scratch']
  #allocation2 [shape = 'f32[24,32]{1,0:T(8,128)}', space=vmem, size = 0x3000, scoped, tag = 'scratch operand']
  #allocation3 [shape = 's32[1]{0}', space=sflag, size = 0x4, scoped, tag = 'scoped memory for gatr_to_e.1']
  #allocation4 [shape = 'u8[512]{0}', space=smem, size = 0x200, scoped, tag = 'prefetched SMEM operand 0']
  %s0 = inlined_call_operand.vmem [shape: s32[24], index: 0, kind: input, shape index: {}]
  %s1 = inlined_call_operand.vmem [shape: f32[16,128], index: 1, kind: input, shape index: {}, may-alias: {1,9}]
  %s2 = inlined_call_operand.vmem [shape: f32[24,32], index: 2, kind: input, shape index: {}]
  %s3 = inlined_call_operand.vmem [shape: s32[2,24], index: 3, kind: input, shape index: {}]
  %s4 = inlined_call_operand.vmem [shape: f32[32,384], index: 4, kind: input, shape index: {}]
  %s5 = inlined_call_operand.vmem [shape: f32[1,384], index: 5, kind: input, shape index: {}]
  %s6 = inlined_call_operand.vmem [shape: f32[3,32], index: 6, kind: input, shape index: {}]
  %s7 = inlined_call_operand.vmem [shape: f32[3,1], index: 7, kind: input, shape index: {}]
  %s8 = inlined_call_operand.vmem [shape: f32[3,128], index: 8, kind: input, shape index: {}]
  %s9 = inlined_call_operand.vmem [shape: f32[16,128], index: 9, kind: output, shape index: {}, may-alias: {1,9}]
  %s10 = sld [smem:[#allocation0]]
  $region42: #{gatr_to_e.1} parent=0
    _
  %s12 = ssub.s32 1, %s10
  %s13 = scalar_select 0, %s12, %s10
  %s14 = sshll.u32 %s0, 4
  %s15 = int_to_ptr.vmem [resolvable:$true] %s14
  %17 = dma.vmem_to_smem %s15, 16, [#allocation4], [#allocation3]
  %18 = dma.done [#allocation3], 16
  %19 = sfence
  // Predicated region
  $region2: #{gatr_to_e.1} parent=0 // pred_check
    _
  $region3: #{gatr_to_e.1} parent=0 // pred_check_branch
    %21 = sbr.rel (0) target = $region5
  $region4: #{gatr_to_e.1} parent=0 // pred_region
    _
  $region5: #{gatr_to_e.1} parent=0 // pred_fallthru
    _
  // Predicated region
  $region6: #{gatr_to_e.1} parent=0 // pred_check
    _
  $region7: #{gatr_to_e.1} parent=0 // pred_check_branch
    %23 = sbr.rel (0) target = $region9
  $region8: #{gatr_to_e.1} parent=0 // pred_region
    _
  $region9: #{gatr_to_e.1} parent=0 // pred_fallthru
    _
  // Predicated region
  $region10: #{gatr_to_e.1} parent=0 // pred_check
    _
  $region11: #{gatr_to_e.1} parent=0 // pred_check_branch
    %25 = sbr.rel (0) target = $region13
  $region12: #{gatr_to_e.1} parent=0 // pred_region
    _
  $region13: #{gatr_to_e.1} parent=0 // pred_fallthru
    _
  // Predicated region
  $region14: #{gatr_to_e.1} parent=0 // pred_check
    _
  $region15: #{gatr_to_e.1} parent=0 // pred_check_branch
    %27 = sbr.rel (0) target = $region17
  $region16: #{gatr_to_e.1} parent=0 // pred_region
    _
  $region17: #{gatr_to_e.1} parent=0 // pred_fallthru
    _
  // Predicated region
  $region18: #{gatr_to_e.1} parent=0 // pred_check
    _
  $region19: #{gatr_to_e.1} parent=0 // pred_check_branch
    %29 = sbr.rel (0) target = $region21
  $region20: #{gatr_to_e.1} parent=0 // pred_region
    _
  $region21: #{gatr_to_e.1} parent=0 // pred_fallthru
    _
  // Predicated region
  $region22: #{gatr_to_e.1} parent=0 // pred_check
    _
  $region23: #{gatr_to_e.1} parent=0 // pred_check_branch
    %31 = sbr.rel (0) target = $region25
  $region24: #{gatr_to_e.1} parent=0 // pred_region
    _
  $region25: #{gatr_to_e.1} parent=0 // pred_fallthru
    _
  // Predicated region
  $region26: #{gatr_to_e.1} parent=0 // pred_check
    _
  $region27: #{gatr_to_e.1} parent=0 // pred_check_branch
    %33 = sbr.rel (0) target = $region29
  $region28: #{gatr_to_e.1} parent=0 // pred_region
    _
  $region29: #{gatr_to_e.1} parent=0 // pred_fallthru
    _
  // Predicated region
  $region30: #{gatr_to_e.1} parent=0 // pred_check
    _
  $region31: #{gatr_to_e.1} parent=0 // pred_check_branch
    %35 = sbr.rel (0) target = $region33
  $region32: #{gatr_to_e.1} parent=0 // pred_region
    _
  $region33: #{gatr_to_e.1} parent=0 // pred_fallthru
    _
  %s37 = sld [smem:[#allocation4]]
  %s38 = scalar_lea.vmem %s2, %s37
  %v39 = vld [vmem:[%s38] sm:$0x1]
  %vm40 = vcmask 253952
  %41 = vst.msk [vmem:[#allocation2] sm:$0x1] %vm40, %v39
  %s42 = sld [smem:[#allocation4 + $0x1]]
  %s43 = scalar_lea.vmem %s2, %s42
  %v44 = vld [vmem:[%s43] sm:$0x1]
  %45 = vst.msk [vmem:[#allocation2 + $0x1] sm:$0x1] %vm40, %v44
  %s46 = sld [smem:[#allocation4 + $0x2]]
  %s47 = scalar_lea.vmem %s2, %s46
  %v48 = vld [vmem:[%s47] sm:$0x1]
  %49 = vst.msk [vmem:[#allocation2 + $0x2] sm:$0x1] %vm40, %v48
  %s50 = sld [smem:[#allocation4 + $0x3]]
  %s51 = scalar_lea.vmem %s2, %s50
  %v52 = vld [vmem:[%s51] sm:$0x1]
  %53 = vst.msk [vmem:[#allocation2 + $0x3] sm:$0x1] %vm40, %v52
  %s54 = sld [smem:[#allocation4 + $0x4]]
  %s55 = scalar_lea.vmem %s2, %s54
  %v56 = vld [vmem:[%s55] sm:$0x1]
  %57 = vst.msk [vmem:[#allocation2 + $0x4] sm:$0x1] %vm40, %v56
  %s58 = sld [smem:[#allocation4 + $0x5]]
  %s59 = scalar_lea.vmem %s2, %s58
  %v60 = vld [vmem:[%s59] sm:$0x1]
  %61 = vst.msk [vmem:[#allocation2 + $0x5] sm:$0x1] %vm40, %v60
  %s62 = sld [smem:[#allocation4 + $0x6]]
  %s63 = scalar_lea.vmem %s2, %s62
  %v64 = vld [vmem:[%s63] sm:$0x1]
  %65 = vst.msk [vmem:[#allocation2 + $0x6] sm:$0x1] %vm40, %v64
  %s66 = sld [smem:[#allocation4 + $0x7]]
  %s67 = scalar_lea.vmem %s2, %s66
  %v68 = vld [vmem:[%s67] sm:$0x1]
  %69 = vst.msk [vmem:[#allocation2 + $0x7] sm:$0x1] %vm40, %v68
  %s70 = sld [smem:[#allocation4 + $0x8]]
  %s71 = scalar_lea.vmem %s2, %s70
  %v72 = vld [vmem:[%s71] sm:$0x1]
  %73 = vst.msk [vmem:[#allocation2 + $0x8] sm:$0x1] %vm40, %v72
  %s74 = sld [smem:[#allocation4 + $0x9]]
  %s75 = scalar_lea.vmem %s2, %s74
  %v76 = vld [vmem:[%s75] sm:$0x1]
  %77 = vst.msk [vmem:[#allocation2 + $0x9] sm:$0x1] %vm40, %v76
  %s78 = sld [smem:[#allocation4 + $0xa]]
  %s79 = scalar_lea.vmem %s2, %s78
  %v80 = vld [vmem:[%s79] sm:$0x1]
  %81 = vst.msk [vmem:[#allocation2 + $0xa] sm:$0x1] %vm40, %v80
  %s82 = sld [smem:[#allocation4 + $0xb]]
  %s83 = scalar_lea.vmem %s2, %s82
  %v84 = vld [vmem:[%s83] sm:$0x1]
  %85 = vst.msk [vmem:[#allocation2 + $0xb] sm:$0x1] %vm40, %v84
  %s86 = sld [smem:[#allocation4 + $0xc]]
  %s87 = scalar_lea.vmem %s2, %s86
  %v88 = vld [vmem:[%s87] sm:$0x1]
  %89 = vst.msk [vmem:[#allocation2 + $0xc] sm:$0x1] %vm40, %v88
  %s90 = sld [smem:[#allocation4 + $0xd]]
  %s91 = scalar_lea.vmem %s2, %s90
  %v92 = vld [vmem:[%s91] sm:$0x1]
  %93 = vst.msk [vmem:[#allocation2 + $0xd] sm:$0x1] %vm40, %v92
  %s94 = sld [smem:[#allocation4 + $0xe]]
  %s95 = scalar_lea.vmem %s2, %s94
  %v96 = vld [vmem:[%s95] sm:$0x1]
  %97 = vst.msk [vmem:[#allocation2 + $0xe] sm:$0x1] %vm40, %v96
  %s98 = sld [smem:[#allocation4 + $0xf]]
  %s99 = scalar_lea.vmem %s2, %s98
  %v100 = vld [vmem:[%s99] sm:$0x1]
  %101 = vst.msk [vmem:[#allocation2 + $0xf] sm:$0x1] %vm40, %v100
  %s102 = sld [smem:[#allocation4 + $0x10]]
  %s103 = scalar_lea.vmem %s2, %s102
  %v104 = vld [vmem:[%s103] sm:$0x1]
  %105 = vst.msk [vmem:[#allocation2 + $0x10] sm:$0x1] %vm40, %v104
  %s106 = sld [smem:[#allocation4 + $0x11]]
  %s107 = scalar_lea.vmem %s2, %s106
  %v108 = vld [vmem:[%s107] sm:$0x1]
  %109 = vst.msk [vmem:[#allocation2 + $0x11] sm:$0x1] %vm40, %v108
  %s110 = sld [smem:[#allocation4 + $0x12]]
  %s111 = scalar_lea.vmem %s2, %s110
  %v112 = vld [vmem:[%s111] sm:$0x1]
  %113 = vst.msk [vmem:[#allocation2 + $0x12] sm:$0x1] %vm40, %v112
  %s114 = sld [smem:[#allocation4 + $0x13]]
  %s115 = scalar_lea.vmem %s2, %s114
  %v116 = vld [vmem:[%s115] sm:$0x1]
  %117 = vst.msk [vmem:[#allocation2 + $0x13] sm:$0x1] %vm40, %v116
  %s118 = sld [smem:[#allocation4 + $0x14]]
  %s119 = scalar_lea.vmem %s2, %s118
  %v120 = vld [vmem:[%s119] sm:$0x1]
  %121 = vst.msk [vmem:[#allocation2 + $0x14] sm:$0x1] %vm40, %v120
  %s122 = sld [smem:[#allocation4 + $0x15]]
  %s123 = scalar_lea.vmem %s2, %s122
  %v124 = vld [vmem:[%s123] sm:$0x1]
  %125 = vst.msk [vmem:[#allocation2 + $0x15] sm:$0x1] %vm40, %v124
  %s126 = sld [smem:[#allocation4 + $0x16]]
  %s127 = scalar_lea.vmem %s2, %s126
  %v128 = vld [vmem:[%s127] sm:$0x1]
  %129 = vst.msk [vmem:[#allocation2 + $0x16] sm:$0x1] %vm40, %v128
  %s130 = sld [smem:[#allocation4 + $0x17]]
  %s131 = scalar_lea.vmem %s2, %s130
  %v132 = vld [vmem:[%s131] sm:$0x1]
  %133 = vst.msk [vmem:[#allocation2 + $0x17] sm:$0x1] %vm40, %v132
  %v134 = vld [vmem:[%s2] sm:$0xff]
  %v135 = vld [vmem:[%s2 + $0x8] sm:$0xff]
  %v136 = vld [vmem:[%s2 + $0x10] sm:$0xff]
  %v137 = vld [vmem:[#allocation2] sm:$0xff]
  %v138 = vld [vmem:[#allocation2 + $0x8] sm:$0xff]
  %v139 = vld [vmem:[#allocation2 + $0x10] sm:$0xff]
  %v140 = vld [vmem:[%s4] sm:$0xff]
  %v141 = vld [vmem:[%s4 + $0x8] sm:$0xff]
  %v142 = vld [vmem:[%s4 + $0x10] sm:$0xff]
  %v143 = vld [vmem:[%s4 + $0x18] sm:$0xff]
  %v144 = vld [vmem:[%s4 + $0x20] sm:$0xff]
  %v145 = vld [vmem:[%s4 + $0x28] sm:$0xff]
  %v146 = vld [vmem:[%s4 + $0x30] sm:$0xff]
  %v147 = vld [vmem:[%s4 + $0x38] sm:$0xff]
  %v148 = vld [vmem:[%s4 + $0x40] sm:$0xff]
  %v149 = vld [vmem:[%s4 + $0x48] sm:$0xff]
  %v150 = vld [vmem:[%s4 + $0x50] sm:$0xff]
  %v151 = vld [vmem:[%s4 + $0x58] sm:$0xff]
  %v152 = vld [vmem:[%s5] sm:$0x7]
  %v154 = vlaneseq
  %v155 = vshrl.u32 %v154, 7
  %v156 = vsub.s32 0, %v155
  %v157 = vrot.slane %v152, %v156
  %v158 = vlaneseq
  %v159 = vshrl.u32 %v158, 7
  %v160 = vsub.s32 1, %v159
  %v161 = vrot.slane %v152, %v160
  %v162 = vlaneseq
  %v163 = vshrl.u32 %v162, 7
  %v164 = vsub.s32 2, %v163
  %v165 = vrot.slane %v152, %v164
  %vm169 = vcmask 261120
  %v171 = vsel %vm169, %v137, 0
  %v174 = vsel %vm169, %v138, 0
  %v177 = vsel %vm169, %v139, 0
  %179 = vmatprep.subr.mxu0 %v141
  %180 = vmatpush1.msra.mxu0 %v140
  %181 = vmatprep.subr.mxu0 %v144
  %182 = vmatpush1.msra.mxu0 %v143
  %183 = vmatprep.subr.mxu0 %v147
  %184 = vmatpush1.msra.mxu0 %v146
  %185 = vmatprep.subr.mxu0 %v150
  %186 = vmatpush1.msra.mxu0 %v149
  %187 = vmatprep.subr.mxu0 0.0
  %188 = vmatpush1.msra.mxu0 0.0
  %189 = vmatprep.subr.mxu0 0.0
  %190 = vmatpush1.msra.mxu0 0.0
  %191 = vmatprep.subr.mxu0 0.0
  %192 = vmatpush1.msra.mxu0 0.0
  %193 = vmatprep.subr.mxu0 0.0
  %194 = vmatpush1.msra.mxu0 0.0
  %195 = vmatprep.subr.mxu0 0.0
  %196 = vmatpush1.msra.mxu0 0.0
  %197 = vmatprep.subr.mxu0 0.0
  %198 = vmatpush1.msra.mxu0 0.0
  %199 = vmatprep.subr.mxu0 0.0
  %200 = vmatpush1.msra.mxu0 0.0
  %201 = vmatprep.subr.mxu0 0.0
  %202 = vmatpush1.msra.mxu0 0.0
  %203 = vmatprep.subr.mxu0 0.0
  %204 = vmatpush1.msra.mxu0 0.0
  %205 = vmatprep.subr.mxu0 0.0
  %206 = vmatpush1.msra.mxu0 0.0
  %207 = vmatprep.subr.mxu0 0.0
  %208 = vmatpush1.msra.mxu0 0.0
  %209 = vmatprep.subr.mxu0 0.0
  %210 = vmatpush1.msra.mxu0 0.0
  %211 = vmatprep.subr.mxu0 0.0
  %212 = vmatpush1.msra.mxu0 0.0
  %213 = vmatprep.subr.mxu0 0.0
  %214 = vmatpush1.msra.mxu0 0.0
  %215 = vmatprep.subr.mxu0 0.0
  %216 = vmatpush1.msra.mxu0 0.0
  %217 = vmatprep.subr.mxu0 0.0
  %218 = vmatpush1.msra.mxu0 0.0
  %219 = vmatprep.subr.mxu0 0.0
  %220 = vmatpush1.msra.mxu0 0.0
  %221 = vmatprep.subr.mxu0 0.0
  %222 = vmatpush1.msra.mxu0 0.0
  %223 = vmatprep.subr.mxu0 0.0
  %224 = vmatpush1.msra.mxu0 0.0
  %225 = vmatprep.subr.mxu0 0.0
  %226 = vmatpush1.msra.mxu0 0.0
  %227 = vmatprep.subr.mxu0 0.0
  %228 = vmatpush1.msra.mxu0 0.0
  %229 = vmatprep.subr.mxu0 0.0
  %230 = vmatpush1.msra.mxu0 0.0
  %231 = vmatprep.subr.mxu0 0.0
  %232 = vmatpush1.msra.mxu0 0.0
  %233 = vmatprep.subr.mxu0 0.0
  %234 = vmatpush1.msra.mxu0 0.0
  %235 = vmatprep.subr.mxu0 0.0
  %236 = vmatpush1.msra.mxu0 0.0
  %237 = vmatprep.subr.mxu0 0.0
  %238 = vmatpush1.msra.mxu0 0.0
  %239 = vmatprep.subr.mxu0 0.0
  %240 = vmatpush1.msra.mxu0 0.0
  %241 = vmatprep.subr.mxu0 0.0
  %242 = vmatpush1.msra.mxu0 0.0
  %243 = vmatprep.mubr.f32.mxu0 0.0
  %244 = vmatmul.mubr.f32.gmra.mrb[0].mxu0 %v171
  %v245 = vpop.f32.mrb[0].mxu0
  %v246 = vadd.f32 %v157, %v245
  %v247 = vpop.f32.mrb[0].mxu0
  %v248 = vadd.f32 %v161, %v247
  %249 = vmatprep.mubr.f32.mxu0 0.0
  %250 = vmatmul.mubr.f32.gmra.mrb[0].mxu0 %v174
  %v251 = vpop.f32.mrb[0].mxu0
  %v252 = vadd.f32 %v157, %v251
  %v253 = vpop.f32.mrb[0].mxu0
  %v254 = vadd.f32 %v161, %v253
  %255 = vmatprep.mubr.f32.mxu0 0.0
  %256 = vmatmul.mubr.f32.gmra.mrb[0].mxu0 %v177
  %v257 = vpop.f32.mrb[0].mxu0
  %v258 = vadd.f32 %v157, %v257
  %v259 = vpop.f32.mrb[0].mxu0
  %v260 = vadd.f32 %v161, %v259
  %261 = vdwg.mxu0
  %262 = vmatprep.subr.mxu0 0.0
  %263 = vmatpush1.msra.mxu0 %v142
  %264 = vmatprep.subr.mxu0 0.0
  %265 = vmatpush1.msra.mxu0 %v145
  %266 = vmatprep.subr.mxu0 0.0
  %267 = vmatpush1.msra.mxu0 %v148
  %268 = vmatprep.subr.mxu0 0.0
  %269 = vmatpush1.msra.mxu0 %v151
  %270 = vmatprep.subr.mxu0 0.0
  %271 = vmatpush1.msra.mxu0 0.0
  %272 = vmatprep.subr.mxu0 0.0
  %273 = vmatpush1.msra.mxu0 0.0
  %274 = vmatprep.subr.mxu0 0.0
  %275 = vmatpush1.msra.mxu0 0.0
  %276 = vmatprep.subr.mxu0 0.0
  %277 = vmatpush1.msra.mxu0 0.0
  %278 = vmatprep.subr.mxu0 0.0
  %279 = vmatpush1.msra.mxu0 0.0
  %280 = vmatprep.subr.mxu0 0.0
  %281 = vmatpush1.msra.mxu0 0.0
  %282 = vmatprep.subr.mxu0 0.0
  %283 = vmatpush1.msra.mxu0 0.0
  %284 = vmatprep.subr.mxu0 0.0
  %285 = vmatpush1.msra.mxu0 0.0
  %286 = vmatprep.subr.mxu0 0.0
  %287 = vmatpush1.msra.mxu0 0.0
  %288 = vmatprep.subr.mxu0 0.0
  %289 = vmatpush1.msra.mxu0 0.0
  %290 = vmatprep.subr.mxu0 0.0
  %291 = vmatpush1.msra.mxu0 0.0
  %292 = vmatprep.subr.mxu0 0.0
  %293 = vmatpush1.msra.mxu0 0.0
  %294 = vmatprep.subr.mxu0 0.0
  %295 = vmatpush1.msra.mxu0 0.0
  %296 = vmatprep.subr.mxu0 0.0
  %297 = vmatpush1.msra.mxu0 0.0
  %298 = vmatprep.subr.mxu0 0.0
  %299 = vmatpush1.msra.mxu0 0.0
  %300 = vmatprep.subr.mxu0 0.0
  %301 = vmatpush1.msra.mxu0 0.0
  %302 = vmatprep.subr.mxu0 0.0
  %303 = vmatpush1.msra.mxu0 0.0
  %304 = vmatprep.subr.mxu0 0.0
  %305 = vmatpush1.msra.mxu0 0.0
  %306 = vmatprep.subr.mxu0 0.0
  %307 = vmatpush1.msra.mxu0 0.0
  %308 = vmatprep.subr.mxu0 0.0
  %309 = vmatpush1.msra.mxu0 0.0
  %310 = vmatprep.subr.mxu0 0.0
  %311 = vmatpush1.msra.mxu0 0.0
  %312 = vmatprep.subr.mxu0 0.0
  %313 = vmatpush1.msra.mxu0 0.0
  %314 = vmatprep.subr.mxu0 0.0
  %315 = vmatpush1.msra.mxu0 0.0
  %316 = vmatprep.subr.mxu0 0.0
  %317 = vmatpush1.msra.mxu0 0.0
  %318 = vmatprep.subr.mxu0 0.0
  %319 = vmatpush1.msra.mxu0 0.0
  %320 = vmatprep.subr.mxu0 0.0
  %321 = vmatpush1.msra.mxu0 0.0
  %322 = vmatprep.subr.mxu0 0.0
  %323 = vmatpush1.msra.mxu0 0.0
  %324 = vmatprep.subr.mxu0 0.0
  %325 = vmatpush1.msra.mxu0 0.0
  %326 = vmatprep.mubr.f32.mxu0 0.0
  %327 = vmatmul.mubr.f32.gmra.mrb[0].mxu0 %v171
  %v328 = vpop.f32.mrb[0].mxu0
  %v329 = vadd.f32 %v165, %v328
  %v330 = vpop.f32.mrb[0].mxu0
  %331 = vmatprep.mubr.f32.mxu0 0.0
  %332 = vmatmul.mubr.f32.gmra.mrb[0].mxu0 %v174
  %v333 = vpop.f32.mrb[0].mxu0
  %v334 = vadd.f32 %v165, %v333
  %v335 = vpop.f32.mrb[0].mxu0
  %336 = vmatprep.mubr.f32.mxu0 0.0
  %337 = vmatmul.mubr.f32.gmra.mrb[0].mxu0 %v177
  %v338 = vpop.f32.mrb[0].mxu0
  %v339 = vadd.f32 %v165, %v338
  %v340 = vpop.f32.mrb[0].mxu0
  %341 = vdwg.mxu0
  %v342 = vld [vmem:[%s6] sm:$0x7]
  %v343 = vld [vmem:[%s7] sm:$0x7]
  %345 = vset.pattern.permute.xlu0 0
  %346 = vperm.xlu0 %345, %v343
  %v347 = vpop.permute.xlu0 %346
  %v350 = vsel %vm169, %v342, 0
  %v353 = vsel %vm169, %v134, 0
  %v356 = vsel %vm169, %v135, 0
  %v359 = vsel %vm169, %v136, 0
  %361 = vmatprep.subr.mxu0 0.0
  %362 = vmatpush1.xpose.msra.mxu0 %v353
  %363 = vmatprep.subr.mxu0 0.0
  %364 = vmatpush1.xpose.msra.mxu0 %v356
  %365 = vmatprep.subr.mxu0 0.0
  %366 = vmatpush1.xpose.msra.mxu0 %v359
  %367 = vmatprep.subr.mxu0 0.0
  %368 = vmatpush1.xpose.msra.mxu0 0.0
  %369 = vmatprep.subr.mxu0 0.0
  %370 = vmatpush1.xpose.msra.mxu0 0.0
  %371 = vmatprep.subr.mxu0 0.0
  %372 = vmatpush1.xpose.msra.mxu0 0.0
  %373 = vmatprep.subr.mxu0 0.0
  %374 = vmatpush1.xpose.msra.mxu0 0.0
  %375 = vmatprep.subr.mxu0 0.0
  %376 = vmatpush1.xpose.msra.mxu0 0.0
  %377 = vmatprep.subr.mxu0 0.0
  %378 = vmatpush1.xpose.msra.mxu0 0.0
  %379 = vmatprep.subr.mxu0 0.0
  %380 = vmatpush1.xpose.msra.mxu0 0.0
  %381 = vmatprep.subr.mxu0 0.0
  %382 = vmatpush1.xpose.msra.mxu0 0.0
  %383 = vmatprep.subr.mxu0 0.0
  %384 = vmatpush1.xpose.msra.mxu0 0.0
  %385 = vmatprep.subr.mxu0 0.0
  %386 = vmatpush1.xpose.msra.mxu0 0.0
  %387 = vmatprep.subr.mxu0 0.0
  %388 = vmatpush1.xpose.msra.mxu0 0.0
  %389 = vmatprep.subr.mxu0 0.0
  %390 = vmatpush1.xpose.msra.mxu0 0.0
  %391 = vmatprep.subr.mxu0 0.0
  %392 = vmatpush1.xpose.msra.mxu0 0.0
  %393 = vmatprep.subr.mxu0 0.0
  %394 = vmatpush1.xpose.msra.mxu0 0.0
  %395 = vmatprep.subr.mxu0 0.0
  %396 = vmatpush1.xpose.msra.mxu0 0.0
  %397 = vmatprep.subr.mxu0 0.0
  %398 = vmatpush1.xpose.msra.mxu0 0.0
  %399 = vmatprep.subr.mxu0 0.0
  %400 = vmatpush1.xpose.msra.mxu0 0.0
  %401 = vmatprep.subr.mxu0 0.0
  %402 = vmatpush1.xpose.msra.mxu0 0.0
  %403 = vmatprep.subr.mxu0 0.0
  %404 = vmatpush1.xpose.msra.mxu0 0.0
  %405 = vmatprep.subr.mxu0 0.0
  %406 = vmatpush1.xpose.msra.mxu0 0.0
  %407 = vmatprep.subr.mxu0 0.0
  %408 = vmatpush1.xpose.msra.mxu0 0.0
  %409 = vmatprep.subr.mxu0 0.0
  %410 = vmatpush1.xpose.msra.mxu0 0.0
  %411 = vmatprep.subr.mxu0 0.0
  %412 = vmatpush1.xpose.msra.mxu0 0.0
  %413 = vmatprep.subr.mxu0 0.0
  %414 = vmatpush1.xpose.msra.mxu0 0.0
  %415 = vmatprep.subr.mxu0 0.0
  %416 = vmatpush1.xpose.msra.mxu0 0.0
  %417 = vmatprep.subr.mxu0 0.0
  %418 = vmatpush1.xpose.msra.mxu0 0.0
  %419 = vmatprep.subr.mxu0 0.0
  %420 = vmatpush1.xpose.msra.mxu0 0.0
  %421 = vmatprep.subr.mxu0 0.0
  %422 = vmatpush1.xpose.msra.mxu0 0.0
  %423 = vmatprep.subr.mxu0 0.0
  %424 = vmatpush1.xpose.msra.mxu0 0.0
  %425 = vmatprep.mubr.f32.mxu0 0.0
  %426 = vmatmul.mubr.f32.gmra.mrb[0].mxu0 %v350
  %v427 = vpop.f32.mrb[0].mxu0
  %v428 = vadd.f32 %v347, %v427
  %v429 = vpop.f32.mrb[0].mxu0
  %430 = vdwg.mxu0
  %v431 = vld [vmem:[%s8] sm:$0x7]
  %v432 = vld [vmem:[%s3] sm:$0x3]
  %v433 = vlaneseq
  %v434 = vshrl.u32 %v433, 7
  %v435 = vadd.s32 %v434, 8
  %v436 = vld [vmem:[%s1] sm:$0xff]
  %v437 = vld [vmem:[%s1 + $0x8] sm:$0xff]
  %v438 = vlaneseq
  %v439 = vshrl.u32 %v438, 7
  %v440 = vsub.s32 0, %v439
  %v441 = vrot.slane %v432, %v440
  %vm442 = vcmp.eq.s32.totalorder %v434, %v441
  %vm443 = vcmp.eq.s32.totalorder %v435, %v441
  %v444 = vsel %vm442, 1, 0
  %v445 = vsel %vm443, 1, 0
  %v446 = vcvt.s32.f32 %v444
  %v447 = vcvt.s32.f32 %v445
  %v448 = vpack.c.bf16 %v447, %v446
  %449 = vmatprep.subr.mxu0 0.0
  %450 = vmatpush1.xpose.msra.mxu0 %v436
  %451 = vmatprep.subr.mxu0 0.0
  %452 = vmatpush1.xpose.msra.mxu0 %v437
  %453 = vmatprep.subr.mxu0 0.0
  %454 = vmatpush1.xpose.msra.mxu0 0.0
  %455 = vmatprep.subr.mxu0 0.0
  %456 = vmatpush1.xpose.msra.mxu0 0.0
  %457 = vmatprep.subr.mxu0 0.0
  %458 = vmatpush1.xpose.msra.mxu0 0.0
  %459 = vmatprep.subr.mxu0 0.0
  %460 = vmatpush1.xpose.msra.mxu0 0.0
  %461 = vmatprep.subr.mxu0 0.0
  %462 = vmatpush1.xpose.msra.mxu0 0.0
  %463 = vmatprep.subr.mxu0 0.0
  %464 = vmatpush1.xpose.msra.mxu0 0.0
  %465 = vmatprep.subr.mxu0 0.0
  %466 = vmatpush1.xpose.msra.mxu0 0.0
  %467 = vmatprep.subr.mxu0 0.0
  %468 = vmatpush1.xpose.msra.mxu0 0.0
  %469 = vmatprep.subr.mxu0 0.0
  %470 = vmatpush1.xpose.msra.mxu0 0.0
  %471 = vmatprep.subr.mxu0 0.0
  %472 = vmatpush1.xpose.msra.mxu0 0.0
  %473 = vmatprep.subr.mxu0 0.0
  %474 = vmatpush1.xpose.msra.mxu0 0.0
  %475 = vmatprep.subr.mxu0 0.0
  %476 = vmatpush1.xpose.msra.mxu0 0.0
  %477 = vmatprep.subr.mxu0 0.0
  %478 = vmatpush1.xpose.msra.mxu0 0.0
  %479 = vmatprep.subr.mxu0 0.0
  %480 = vmatpush1.xpose.msra.mxu0 0.0
  %481 = vmatprep.subr.mxu0 0.0
  %482 = vmatpush1.xpose.msra.mxu0 0.0
  %483 = vmatprep.subr.mxu0 0.0
  %484 = vmatpush1.xpose.msra.mxu0 0.0
  %485 = vmatprep.subr.mxu0 0.0
  %486 = vmatpush1.xpose.msra.mxu0 0.0
  %487 = vmatprep.subr.mxu0 0.0
  %488 = vmatpush1.xpose.msra.mxu0 0.0
  %489 = vmatprep.subr.mxu0 0.0
  %490 = vmatpush1.xpose.msra.mxu0 0.0
  %491 = vmatprep.subr.mxu0 0.0
  %492 = vmatpush1.xpose.msra.mxu0 0.0
  %493 = vmatprep.subr.mxu0 0.0
  %494 = vmatpush1.xpose.msra.mxu0 0.0
  %495 = vmatprep.subr.mxu0 0.0
  %496 = vmatpush1.xpose.msra.mxu0 0.0
  %497 = vmatprep.subr.mxu0 0.0
  %498 = vmatpush1.xpose.msra.mxu0 0.0
  %499 = vmatprep.subr.mxu0 0.0
  %500 = vmatpush1.xpose.msra.mxu0 0.0
  %501 = vmatprep.subr.mxu0 0.0
  %502 = vmatpush1.xpose.msra.mxu0 0.0
  %503 = vmatprep.subr.mxu0 0.0
  %504 = vmatpush1.xpose.msra.mxu0 0.0
  %505 = vmatprep.subr.mxu0 0.0
  %506 = vmatpush1.xpose.msra.mxu0 0.0
  %507 = vmatprep.subr.mxu0 0.0
  %508 = vmatpush1.xpose.msra.mxu0 0.0
  %509 = vmatprep.subr.mxu0 0.0
  %510 = vmatpush1.xpose.msra.mxu0 0.0
  %511 = vmatprep.subr.mxu0 0.0
  %512 = vmatpush1.xpose.msra.mxu0 0.0
  %513 = vmatprep.mubr.f32.mxu0 0.0
  %514 = vmatmul.mubr.f32.gmra.mrb[0].mxu0 %v431
  %v515 = vpop.f32.mrb[0].mxu0
  %v516 = vadd.f32 0.0, %v515
  %v517 = vpop.f32.mrb[0].mxu0
  %518 = vdwg.mxu0
  %v519 = vpack.c.bf16 %v516, %v516
  %vm520 = vcmask 130048
  %v522 = vsel %vm520, %v519, 0
  %524 = vmatprep.subr.bf16.mxu0 0
  %525 = vmatpush1.bf16.msra.mxu0 %v448
  %526 = vmatprep.subr.bf16.mxu0 0
  %527 = vmatpush1.bf16.msra.mxu0 0
  %528 = vmatprep.subr.bf16.mxu0 0
  %529 = vmatpush1.bf16.msra.mxu0 0
  %530 = vmatprep.subr.bf16.mxu0 0
  %531 = vmatpush1.bf16.msra.mxu0 0
  %532 = vmatprep.subr.bf16.mxu0 0
  %533 = vmatpush1.bf16.msra.mxu0 0
  %534 = vmatprep.subr.bf16.mxu0 0
  %535 = vmatpush1.bf16.msra.mxu0 0
  %536 = vmatprep.subr.bf16.mxu0 0
  %537 = vmatpush1.bf16.msra.mxu0 0
  %538 = vmatprep.subr.bf16.mxu0 0
  %539 = vmatpush1.bf16.msra.mxu0 0
  %540 = vmatprep.subr.bf16.mxu0 0
  %541 = vmatpush1.bf16.msra.mxu0 0
  %542 = vmatprep.subr.bf16.mxu0 0
  %543 = vmatpush1.bf16.msra.mxu0 0
  %544 = vmatprep.subr.bf16.mxu0 0
  %545 = vmatpush1.bf16.msra.mxu0 0
  %546 = vmatprep.subr.bf16.mxu0 0
  %547 = vmatpush1.bf16.msra.mxu0 0
  %548 = vmatprep.subr.bf16.mxu0 0
  %549 = vmatpush1.bf16.msra.mxu0 0
  %550 = vmatprep.subr.bf16.mxu0 0
  %551 = vmatpush1.bf16.msra.mxu0 0
  %552 = vmatprep.subr.bf16.mxu0 0
  %553 = vmatpush1.bf16.msra.mxu0 0
  %554 = vmatprep.subr.bf16.mxu0 0
  %555 = vmatpush1.bf16.msra.mxu0 0
  %556 = vmatprep.mubr.bf16.mxu0 0
  %557 = vmatmul.mubr.bf16.gmra.mrb[0].mxu0 %v522
  %v558 = vpop.f32.mrb[0].mxu0
  %v559 = vadd.f32 %v428, %v558
  %v560 = vpop.f32.mrb[0].mxu0
  %v561 = vpop.f32.mrb[0].mxu0
  %v562 = vpop.f32.mrb[0].mxu0
  %563 = vdwg.mxu0
  %vm564 = vcmp.ge.f32.partialorder %v559, 0.0
  %v565 = vmul.f32 %v559, 0.01
  %v566 = vsel %vm564, %v559, %v565
  %v567 = vlaneseq
  %v568 = vshrl.u32 %v567, 7
  %v569 = vsub.s32 0, %v568
  %v570 = vrot.slane %v566, %v569
  %v571 = vsel %vm442, %v570, -1e+30
  %v572 = vsel %vm443, %v570, -1e+30
  %vm573 = vcmask 195584
  %v574 = vsel %vm573, %v571, -inf
  %575 = vmax.xlane.f32.xlu0 %v574
  %v576 = vpop.xlane.xlu0 %575
  %v577 = vsel %vm573, %v572, -inf
  %578 = vmax.xlane.f32.xlu0 %v577
  %v579 = vpop.xlane.xlu0 %578
  %v580 = vpack.c.bf16 %v579, %v576
  %581 = vxpose.xlu0.c.b16.start [1/8] %v580, 128
  %582 = vxpose.xlu0.c.b16.cont [2/8] 0, 128
  %583 = vxpose.xlu0.c.b16.cont [3/8] 0, 128
  %584 = vxpose.xlu0.c.b16.cont [4/8] 0, 128
  %585 = vxpose.xlu0.c.b16.cont [5/8] 0, 128
  %586 = vxpose.xlu0.c.b16.cont [6/8] 0, 128
  %587 = vxpose.xlu0.c.b16.cont [7/8] 0, 128
  %588 = vxpose.xlu0.c.b16.end [8/8] 0, 128
  %v589 = vpop.trf.xlu0
  %v590 = vpop.trf.xlu0
  %v591 = vpop.trf.xlu0
  %v592 = vpop.trf.xlu0
  %v593 = vpop.trf.xlu0
  %v594 = vpop.trf.xlu0
  %v595 = vpop.trf.xlu0
  %v596 = vpop.trf.xlu0
  %v598 = vsel %vm520, %v589, 0
  %600 = vmatprep.subr.bf16.mxu0 0
  %601 = vmatpush1.bf16.msra.mxu0 %v448
  %602 = vmatprep.subr.bf16.mxu0 0
  %603 = vmatpush1.bf16.msra.mxu0 0
  %604 = vmatprep.subr.bf16.mxu0 0
  %605 = vmatpush1.bf16.msra.mxu0 0
  %606 = vmatprep.subr.bf16.mxu0 0
  %607 = vmatpush1.bf16.msra.mxu0 0
  %608 = vmatprep.subr.bf16.mxu0 0
  %609 = vmatpush1.bf16.msra.mxu0 0
  %610 = vmatprep.subr.bf16.mxu0 0
  %611 = vmatpush1.bf16.msra.mxu0 0
  %612 = vmatprep.subr.bf16.mxu0 0
  %613 = vmatpush1.bf16.msra.mxu0 0
  %614 = vmatprep.subr.bf16.mxu0 0
  %615 = vmatpush1.bf16.msra.mxu0 0
  %616 = vmatprep.subr.bf16.mxu0 0
  %617 = vmatpush1.bf16.msra.mxu0 0
  %618 = vmatprep.subr.bf16.mxu0 0
  %619 = vmatpush1.bf16.msra.mxu0 0
  %620 = vmatprep.subr.bf16.mxu0 0
  %621 = vmatpush1.bf16.msra.mxu0 0
  %622 = vmatprep.subr.bf16.mxu0 0
  %623 = vmatpush1.bf16.msra.mxu0 0
  %624 = vmatprep.subr.bf16.mxu0 0
  %625 = vmatpush1.bf16.msra.mxu0 0
  %626 = vmatprep.subr.bf16.mxu0 0
  %627 = vmatpush1.bf16.msra.mxu0 0
  %628 = vmatprep.subr.bf16.mxu0 0
  %629 = vmatpush1.bf16.msra.mxu0 0
  %630 = vmatprep.subr.bf16.mxu0 0
  %631 = vmatpush1.bf16.msra.mxu0 0
  %632 = vmatprep.mubr.bf16.mxu0 0
  %633 = vmatmul.mubr.bf16.gmra.mrb[0].mxu0 %v598
  %v634 = vpop.f32.mrb[0].mxu0
  %v635 = vadd.f32 0.0, %v634
  %v636 = vpop.f32.mrb[0].mxu0
  %v637 = vpop.f32.mrb[0].mxu0
  %v638 = vpop.f32.mrb[0].mxu0
  %639 = vdwg.mxu0
  %v640 = vsub.f32 %v566, %v635
  %v641 = vmul.f32 %v640, 1.442695
  %v642 = vpow.pop %v641
  %v643 = vpack.c.bf16 %v642, %v642
  %v645 = vpack.i.b16 %v643, %v643
  %v647 = vlaneseq
  %v648 = vshrl.u32 %v647, 7
  %v649 = vsub.s32 0, %v648
  %v650 = vrot.slane %v645, %v649
  %v651 = vmul.bf16 %v448, %v650
  %v652 = vunpack.c.l.bf16 %v651
  %v653 = vunpack.c.h.bf16 %v651
  %v654 = vsel %vm573, %v652, 0.0
  %655 = vadd.xlane.f32.xlu0 %v654
  %v656 = vpop.xlane.xlu0 %655
  %v657 = vsel %vm573, %v653, 0.0
  %658 = vadd.xlane.f32.xlu0 %v657
  %v659 = vpop.xlane.xlu0 %658
  %v660 = vpack.c.bf16 %v252, %v246
  %v661 = vpack.c.bf16 %v258, %v258
  %v663 = vsel %vm573, %v651, 0
  %vm665 = vcmask 1043456
  %v667 = vsel %vm665, %v661, 0
  %669 = vmatprep.subr.bf16.mxu0 0
  %670 = vmatpush1.bf16.msra.mxu0 %v660
  %671 = vmatprep.subr.bf16.mxu0 0
  %672 = vmatpush1.bf16.msra.mxu0 %v667
  %673 = vmatprep.subr.bf16.mxu0 0
  %674 = vmatpush1.bf16.msra.mxu0 0
  %675 = vmatprep.subr.bf16.mxu0 0
  %676 = vmatpush1.bf16.msra.mxu0 0
  %677 = vmatprep.subr.bf16.mxu0 0
  %678 = vmatpush1.bf16.msra.mxu0 0
  %679 = vmatprep.subr.bf16.mxu0 0
  %680 = vmatpush1.bf16.msra.mxu0 0
  %681 = vmatprep.subr.bf16.mxu0 0
  %682 = vmatpush1.bf16.msra.mxu0 0
  %683 = vmatprep.subr.bf16.mxu0 0
  %684 = vmatpush1.bf16.msra.mxu0 0
  %685 = vmatprep.subr.bf16.mxu0 0
  %686 = vmatpush1.bf16.msra.mxu0 0
  %687 = vmatprep.subr.bf16.mxu0 0
  %688 = vmatpush1.bf16.msra.mxu0 0
  %689 = vmatprep.subr.bf16.mxu0 0
  %690 = vmatpush1.bf16.msra.mxu0 0
  %691 = vmatprep.subr.bf16.mxu0 0
  %692 = vmatpush1.bf16.msra.mxu0 0
  %693 = vmatprep.subr.bf16.mxu0 0
  %694 = vmatpush1.bf16.msra.mxu0 0
  %695 = vmatprep.subr.bf16.mxu0 0
  %696 = vmatpush1.bf16.msra.mxu0 0
  %697 = vmatprep.subr.bf16.mxu0 0
  %698 = vmatpush1.bf16.msra.mxu0 0
  %699 = vmatprep.subr.bf16.mxu0 0
  %700 = vmatpush1.bf16.msra.mxu0 0
  %701 = vmatprep.mubr.bf16.mxu0 0
  %702 = vmatmul.mubr.bf16.gmra.mrb[0].mxu0 %v663
  %v703 = vpop.f32.mrb[0].mxu0
  %v704 = vadd.f32 0.0, %v703
  %v705 = vpop.f32.mrb[0].mxu0
  %v706 = vpop.f32.mrb[0].mxu0
  %v707 = vadd.f32 0.0, %v706
  %v708 = vpop.f32.mrb[0].mxu0
  %709 = vdwg.mxu0
  %v710 = vadd.f32 %v656, 1e-16
  %v711 = vadd.f32 %v659, 1e-16
  %v712 = vrcp.pop %v710
  %v713 = vrcp.pop %v711
  %v714 = vmul.f32 %v704, %v712
  %v715 = vmul.f32 %v707, %v713
  %v716 = vmax.f32 %v714, 0.0
  %v717 = vmax.f32 %v715, 0.0
  %v718 = vadd.f32 %v436, %v716
  %v719 = vadd.f32 %v437, %v717
  %v720 = vlaneseq
  %v721 = vshrl.u32 %v720, 7
  %v722 = vsub.s32 1, %v721
  %v723 = vrot.slane %v432, %v722
  %vm724 = vcmp.eq.s32.totalorder %v434, %v723
  %vm725 = vcmp.eq.s32.totalorder %v435, %v723
  %v726 = vsel %vm724, 1, 0
  %v727 = vsel %vm725, 1, 0
  %v728 = vcvt.s32.f32 %v726
  %v729 = vcvt.s32.f32 %v727
  %v730 = vpack.c.bf16 %v729, %v728
  %v732 = vrot.slane %v431, 1
  %734 = vmatprep.subr.mxu0 0.0
  %735 = vmatpush1.xpose.msra.mxu0 %v718
  %736 = vmatprep.subr.mxu0 0.0
  %737 = vmatpush1.xpose.msra.mxu0 %v719
  %738 = vmatprep.subr.mxu0 0.0
  %739 = vmatpush1.xpose.msra.mxu0 0.0
  %740 = vmatprep.subr.mxu0 0.0
  %741 = vmatpush1.xpose.msra.mxu0 0.0
  %742 = vmatprep.subr.mxu0 0.0
  %743 = vmatpush1.xpose.msra.mxu0 0.0
  %744 = vmatprep.subr.mxu0 0.0
  %745 = vmatpush1.xpose.msra.mxu0 0.0
  %746 = vmatprep.subr.mxu0 0.0
  %747 = vmatpush1.xpose.msra.mxu0 0.0
  %748 = vmatprep.subr.mxu0 0.0
  %749 = vmatpush1.xpose.msra.mxu0 0.0
  %750 = vmatprep.subr.mxu0 0.0
  %751 = vmatpush1.xpose.msra.mxu0 0.0
  %752 = vmatprep.subr.mxu0 0.0
  %753 = vmatpush1.xpose.msra.mxu0 0.0
  %754 = vmatprep.subr.mxu0 0.0
  %755 = vmatpush1.xpose.msra.mxu0 0.0
  %756 = vmatprep.subr.mxu0 0.0
  %757 = vmatpush1.xpose.msra.mxu0 0.0
  %758 = vmatprep.subr.mxu0 0.0
  %759 = vmatpush1.xpose.msra.mxu0 0.0
  %760 = vmatprep.subr.mxu0 0.0
  %761 = vmatpush1.xpose.msra.mxu0 0.0
  %762 = vmatprep.subr.mxu0 0.0
  %763 = vmatpush1.xpose.msra.mxu0 0.0
  %764 = vmatprep.subr.mxu0 0.0
  %765 = vmatpush1.xpose.msra.mxu0 0.0
  %766 = vmatprep.subr.mxu0 0.0
  %767 = vmatpush1.xpose.msra.mxu0 0.0
  %768 = vmatprep.subr.mxu0 0.0
  %769 = vmatpush1.xpose.msra.mxu0 0.0
  %770 = vmatprep.subr.mxu0 0.0
  %771 = vmatpush1.xpose.msra.mxu0 0.0
  %772 = vmatprep.subr.mxu0 0.0
  %773 = vmatpush1.xpose.msra.mxu0 0.0
  %774 = vmatprep.subr.mxu0 0.0
  %775 = vmatpush1.xpose.msra.mxu0 0.0
  %776 = vmatprep.subr.mxu0 0.0
  %777 = vmatpush1.xpose.msra.mxu0 0.0
  %778 = vmatprep.subr.mxu0 0.0
  %779 = vmatpush1.xpose.msra.mxu0 0.0
  %780 = vmatprep.subr.mxu0 0.0
  %781 = vmatpush1.xpose.msra.mxu0 0.0
  %782 = vmatprep.subr.mxu0 0.0
  %783 = vmatpush1.xpose.msra.mxu0 0.0
  %784 = vmatprep.subr.mxu0 0.0
  %785 = vmatpush1.xpose.msra.mxu0 0.0
  %786 = vmatprep.subr.mxu0 0.0
  %787 = vmatpush1.xpose.msra.mxu0 0.0
  %788 = vmatprep.subr.mxu0 0.0
  %789 = vmatpush1.xpose.msra.mxu0 0.0
  %790 = vmatprep.subr.mxu0 0.0
  %791 = vmatpush1.xpose.msra.mxu0 0.0
  %792 = vmatprep.subr.mxu0 0.0
  %793 = vmatpush1.xpose.msra.mxu0 0.0
  %794 = vmatprep.subr.mxu0 0.0
  %795 = vmatpush1.xpose.msra.mxu0 0.0
  %796 = vmatprep.subr.mxu0 0.0
  %797 = vmatpush1.xpose.msra.mxu0 0.0
  %798 = vmatprep.mubr.f32.mxu0 0.0
  %799 = vmatmul.mubr.f32.gmra.mrb[0].mxu0 %v732
  %v800 = vpop.f32.mrb[0].mxu0
  %v801 = vadd.f32 0.0, %v800
  %v802 = vpop.f32.mrb[0].mxu0
  %803 = vdwg.mxu0
  %v804 = vpack.c.bf16 %v801, %v801
  %v806 = vrot.slane %v428, 1
  %v809 = vsel %vm520, %v804, 0
  %811 = vmatprep.subr.bf16.mxu0 0
  %812 = vmatpush1.bf16.msra.mxu0 %v730
  %813 = vmatprep.subr.bf16.mxu0 0
  %814 = vmatpush1.bf16.msra.mxu0 0
  %815 = vmatprep.subr.bf16.mxu0 0
  %816 = vmatpush1.bf16.msra.mxu0 0
  %817 = vmatprep.subr.bf16.mxu0 0
  %818 = vmatpush1.bf16.msra.mxu0 0
  %819 = vmatprep.subr.bf16.mxu0 0
  %820 = vmatpush1.bf16.msra.mxu0 0
  %821 = vmatprep.subr.bf16.mxu0 0
  %822 = vmatpush1.bf16.msra.mxu0 0
  %823 = vmatprep.subr.bf16.mxu0 0
  %824 = vmatpush1.bf16.msra.mxu0 0
  %825 = vmatprep.subr.bf16.mxu0 0
  %826 = vmatpush1.bf16.msra.mxu0 0
  %827 = vmatprep.subr.bf16.mxu0 0
  %828 = vmatpush1.bf16.msra.mxu0 0
  %829 = vmatprep.subr.bf16.mxu0 0
  %830 = vmatpush1.bf16.msra.mxu0 0
  %831 = vmatprep.subr.bf16.mxu0 0
  %832 = vmatpush1.bf16.msra.mxu0 0
  %833 = vmatprep.subr.bf16.mxu0 0
  %834 = vmatpush1.bf16.msra.mxu0 0
  %835 = vmatprep.subr.bf16.mxu0 0
  %836 = vmatpush1.bf16.msra.mxu0 0
  %837 = vmatprep.subr.bf16.mxu0 0
  %838 = vmatpush1.bf16.msra.mxu0 0
  %839 = vmatprep.subr.bf16.mxu0 0
  %840 = vmatpush1.bf16.msra.mxu0 0
  %841 = vmatprep.subr.bf16.mxu0 0
  %842 = vmatpush1.bf16.msra.mxu0 0
  %843 = vmatprep.mubr.bf16.mxu0 0
  %844 = vmatmul.mubr.bf16.gmra.mrb[0].mxu0 %v809
  %v845 = vpop.f32.mrb[0].mxu0
  %v846 = vadd.f32 %v806, %v845
  %v847 = vpop.f32.mrb[0].mxu0
  %v848 = vpop.f32.mrb[0].mxu0
  %v849 = vpop.f32.mrb[0].mxu0
  %850 = vdwg.mxu0
  %vm851 = vcmp.ge.f32.partialorder %v846, 0.0
  %v852 = vmul.f32 %v846, 0.01
  %v853 = vsel %vm851, %v846, %v852
  %v854 = vlaneseq
  %v855 = vshrl.u32 %v854, 7
  %v856 = vsub.s32 0, %v855
  %v857 = vrot.slane %v853, %v856
  %v858 = vsel %vm724, %v857, -1e+30
  %v859 = vsel %vm725, %v857, -1e+30
  %v860 = vsel %vm573, %v858, -inf
  %861 = vmax.xlane.f32.xlu0 %v860
  %v862 = vpop.xlane.xlu0 %861
  %v863 = vsel %vm573, %v859, -inf
  %864 = vmax.xlane.f32.xlu0 %v863
  %v865 = vpop.xlane.xlu0 %864
  %v866 = vpack.c.bf16 %v865, %v862
  %867 = vxpose.xlu0.c.b16.start [1/8] %v866, 128
  %868 = vxpose.xlu0.c.b16.cont [2/8] 0, 128
  %869 = vxpose.xlu0.c.b16.cont [3/8] 0, 128
  %870 = vxpose.xlu0.c.b16.cont [4/8] 0, 128
  %871 = vxpose.xlu0.c.b16.cont [5/8] 0, 128
  %872 = vxpose.xlu0.c.b16.cont [6/8] 0, 128
  %873 = vxpose.xlu0.c.b16.cont [7/8] 0, 128
  %874 = vxpose.xlu0.c.b16.end [8/8] 0, 128
  %v875 = vpop.trf.xlu0
  %v876 = vpop.trf.xlu0
  %v877 = vpop.trf.xlu0
  %v878 = vpop.trf.xlu0
  %v879 = vpop.trf.xlu0
  %v880 = vpop.trf.xlu0
  %v881 = vpop.trf.xlu0
  %v882 = vpop.trf.xlu0
  %v884 = vsel %vm520, %v875, 0
  %886 = vmatprep.subr.bf16.mxu0 0
  %887 = vmatpush1.bf16.msra.mxu0 %v730
  %888 = vmatprep.subr.bf16.mxu0 0
  %889 = vmatpush1.bf16.msra.mxu0 0
  %890 = vmatprep.subr.bf16.mxu0 0
  %891 = vmatpush1.bf16.msra.mxu0 0
  %892 = vmatprep.subr.bf16.mxu0 0
  %893 = vmatpush1.bf16.msra.mxu0 0
  %894 = vmatprep.subr.bf16.mxu0 0
  %895 = vmatpush1.bf16.msra.mxu0 0
  %896 = vmatprep.subr.bf16.mxu0 0
  %897 = vmatpush1.bf16.msra.mxu0 0
  %898 = vmatprep.subr.bf16.mxu0 0
  %899 = vmatpush1.bf16.msra.mxu0 0
  %900 = vmatprep.subr.bf16.mxu0 0
  %901 = vmatpush1.bf16.msra.mxu0 0
  %902 = vmatprep.subr.bf16.mxu0 0
  %903 = vmatpush1.bf16.msra.mxu0 0
  %904 = vmatprep.subr.bf16.mxu0 0
  %905 = vmatpush1.bf16.msra.mxu0 0
  %906 = vmatprep.subr.bf16.mxu0 0
  %907 = vmatpush1.bf16.msra.mxu0 0
  %908 = vmatprep.subr.bf16.mxu0 0
  %909 = vmatpush1.bf16.msra.mxu0 0
  %910 = vmatprep.subr.bf16.mxu0 0
  %911 = vmatpush1.bf16.msra.mxu0 0
  %912 = vmatprep.subr.bf16.mxu0 0
  %913 = vmatpush1.bf16.msra.mxu0 0
  %914 = vmatprep.subr.bf16.mxu0 0
  %915 = vmatpush1.bf16.msra.mxu0 0
  %916 = vmatprep.subr.bf16.mxu0 0
  %917 = vmatpush1.bf16.msra.mxu0 0
  %918 = vmatprep.mubr.bf16.mxu0 0
  %919 = vmatmul.mubr.bf16.gmra.mrb[0].mxu0 %v884
  %v920 = vpop.f32.mrb[0].mxu0
  %v921 = vadd.f32 0.0, %v920
  %v922 = vpop.f32.mrb[0].mxu0
  %v923 = vpop.f32.mrb[0].mxu0
  %v924 = vpop.f32.mrb[0].mxu0
  %925 = vdwg.mxu0
  %v926 = vsub.f32 %v853, %v921
  %v927 = vmul.f32 %v926, 1.442695
  %v928 = vpow.pop %v927
  %v929 = vpack.c.bf16 %v928, %v928
  %v931 = vpack.i.b16 %v929, %v929
  %v933 = vlaneseq
  %v934 = vshrl.u32 %v933, 7
  %v935 = vsub.s32 0, %v934
  %v936 = vrot.slane %v931, %v935
  %v937 = vmul.bf16 %v730, %v936
  %v938 = vunpack.c.l.bf16 %v937
  %v939 = vunpack.c.h.bf16 %v937
  %v940 = vsel %vm573, %v938, 0.0
  %941 = vadd.xlane.f32.xlu0 %v940
  %v942 = vpop.xlane.xlu0 %941
  %v943 = vsel %vm573, %v939, 0.0
  %944 = vadd.xlane.f32.xlu0 %v943
  %v945 = vpop.xlane.xlu0 %944
  %v946 = vpack.c.bf16 %v254, %v248
  %v947 = vpack.c.bf16 %v260, %v260
  %v949 = vsel %vm573, %v937, 0
  %v952 = vsel %vm665, %v947, 0
  %954 = vmatprep.subr.bf16.mxu0 0
  %955 = vmatpush1.bf16.msra.mxu0 %v946
  %956 = vmatprep.subr.bf16.mxu0 0
  %957 = vmatpush1.bf16.msra.mxu0 %v952
  %958 = vmatprep.subr.bf16.mxu0 0
  %959 = vmatpush1.bf16.msra.mxu0 0
  %960 = vmatprep.subr.bf16.mxu0 0
  %961 = vmatpush1.bf16.msra.mxu0 0
  %962 = vmatprep.subr.bf16.mxu0 0
  %963 = vmatpush1.bf16.msra.mxu0 0
  %964 = vmatprep.subr.bf16.mxu0 0
  %965 = vmatpush1.bf16.msra.mxu0 0
  %966 = vmatprep.subr.bf16.mxu0 0
  %967 = vmatpush1.bf16.msra.mxu0 0
  %968 = vmatprep.subr.bf16.mxu0 0
  %969 = vmatpush1.bf16.msra.mxu0 0
  %970 = vmatprep.subr.bf16.mxu0 0
  %971 = vmatpush1.bf16.msra.mxu0 0
  %972 = vmatprep.subr.bf16.mxu0 0
  %973 = vmatpush1.bf16.msra.mxu0 0
  %974 = vmatprep.subr.bf16.mxu0 0
  %975 = vmatpush1.bf16.msra.mxu0 0
  %976 = vmatprep.subr.bf16.mxu0 0
  %977 = vmatpush1.bf16.msra.mxu0 0
  %978 = vmatprep.subr.bf16.mxu0 0
  %979 = vmatpush1.bf16.msra.mxu0 0
  %980 = vmatprep.subr.bf16.mxu0 0
  %981 = vmatpush1.bf16.msra.mxu0 0
  %982 = vmatprep.subr.bf16.mxu0 0
  %983 = vmatpush1.bf16.msra.mxu0 0
  %984 = vmatprep.subr.bf16.mxu0 0
  %985 = vmatpush1.bf16.msra.mxu0 0
  %986 = vmatprep.mubr.bf16.mxu0 0
  %987 = vmatmul.mubr.bf16.gmra.mrb[0].mxu0 %v949
  %v988 = vpop.f32.mrb[0].mxu0
  %v989 = vadd.f32 0.0, %v988
  %v990 = vpop.f32.mrb[0].mxu0
  %v991 = vpop.f32.mrb[0].mxu0
  %v992 = vadd.f32 0.0, %v991
  %v993 = vpop.f32.mrb[0].mxu0
  %994 = vdwg.mxu0
  %v995 = vadd.f32 %v942, 1e-16
  %v996 = vadd.f32 %v945, 1e-16
  %v997 = vrcp.pop %v995
  %v998 = vrcp.pop %v996
  %v999 = vmul.f32 %v989, %v997
  %v1000 = vmul.f32 %v992, %v998
  %v1001 = vmax.f32 %v999, 0.0
  %v1002 = vmax.f32 %v1000, 0.0
  %v1003 = vadd.f32 %v718, %v1001
  %v1004 = vadd.f32 %v719, %v1002
  %v1005 = vrot.slane %v431, 2
  %1007 = vmatprep.subr.mxu0 0.0
  %1008 = vmatpush1.xpose.msra.mxu0 %v1003
  %1009 = vmatprep.subr.mxu0 0.0
  %1010 = vmatpush1.xpose.msra.mxu0 %v1004
  %1011 = vmatprep.subr.mxu0 0.0
  %1012 = vmatpush1.xpose.msra.mxu0 0.0
  %1013 = vmatprep.subr.mxu0 0.0
  %1014 = vmatpush1.xpose.msra.mxu0 0.0
  %1015 = vmatprep.subr.mxu0 0.0
  %1016 = vmatpush1.xpose.msra.mxu0 0.0
  %1017 = vmatprep.subr.mxu0 0.0
  %1018 = vmatpush1.xpose.msra.mxu0 0.0
  %1019 = vmatprep.subr.mxu0 0.0
  %1020 = vmatpush1.xpose.msra.mxu0 0.0
  %1021 = vmatprep.subr.mxu0 0.0
  %1022 = vmatpush1.xpose.msra.mxu0 0.0
  %1023 = vmatprep.subr.mxu0 0.0
  %1024 = vmatpush1.xpose.msra.mxu0 0.0
  %1025 = vmatprep.subr.mxu0 0.0
  %1026 = vmatpush1.xpose.msra.mxu0 0.0
  %1027 = vmatprep.subr.mxu0 0.0
  %1028 = vmatpush1.xpose.msra.mxu0 0.0
  %1029 = vmatprep.subr.mxu0 0.0
  %1030 = vmatpush1.xpose.msra.mxu0 0.0
  %1031 = vmatprep.subr.mxu0 0.0
  %1032 = vmatpush1.xpose.msra.mxu0 0.0
  %1033 = vmatprep.subr.mxu0 0.0
  %1034 = vmatpush1.xpose.msra.mxu0 0.0
  %1035 = vmatprep.subr.mxu0 0.0
  %1036 = vmatpush1.xpose.msra.mxu0 0.0
  %1037 = vmatprep.subr.mxu0 0.0
  %1038 = vmatpush1.xpose.msra.mxu0 0.0
  %1039 = vmatprep.subr.mxu0 0.0
  %1040 = vmatpush1.xpose.msra.mxu0 0.0
  %1041 = vmatprep.subr.mxu0 0.0
  %1042 = vmatpush1.xpose.msra.mxu0 0.0
  %1043 = vmatprep.subr.mxu0 0.0
  %1044 = vmatpush1.xpose.msra.mxu0 0.0
  %1045 = vmatprep.subr.mxu0 0.0
  %1046 = vmatpush1.xpose.msra.mxu0 0.0
  %1047 = vmatprep.subr.mxu0 0.0
  %1048 = vmatpush1.xpose.msra.mxu0 0.0
  %1049 = vmatprep.subr.mxu0 0.0
  %1050 = vmatpush1.xpose.msra.mxu0 0.0
  %1051 = vmatprep.subr.mxu0 0.0
  %1052 = vmatpush1.xpose.msra.mxu0 0.0
  %1053 = vmatprep.subr.mxu0 0.0
  %1054 = vmatpush1.xpose.msra.mxu0 0.0
  %1055 = vmatprep.subr.mxu0 0.0
  %1056 = vmatpush1.xpose.msra.mxu0 0.0
  %1057 = vmatprep.subr.mxu0 0.0
  %1058 = vmatpush1.xpose.msra.mxu0 0.0
  %1059 = vmatprep.subr.mxu0 0.0
  %1060 = vmatpush1.xpose.msra.mxu0 0.0
  %1061 = vmatprep.subr.mxu0 0.0
  %1062 = vmatpush1.xpose.msra.mxu0 0.0
  %1063 = vmatprep.subr.mxu0 0.0
  %1064 = vmatpush1.xpose.msra.mxu0 0.0
  %1065 = vmatprep.subr.mxu0 0.0
  %1066 = vmatpush1.xpose.msra.mxu0 0.0
  %1067 = vmatprep.subr.mxu0 0.0
  %1068 = vmatpush1.xpose.msra.mxu0 0.0
  %1069 = vmatprep.subr.mxu0 0.0
  %1070 = vmatpush1.xpose.msra.mxu0 0.0
  %1071 = vmatprep.mubr.f32.mxu0 0.0
  %1072 = vmatmul.mubr.f32.gmra.mrb[0].mxu0 %v1005
  %v1073 = vpop.f32.mrb[0].mxu0
  %v1074 = vadd.f32 0.0, %v1073
  %v1075 = vpop.f32.mrb[0].mxu0
  %1076 = vdwg.mxu0
  %v1077 = vpack.c.bf16 %v1074, %v1074
  %v1078 = vrot.slane %v428, 2
  %v1081 = vsel %vm520, %v1077, 0
  %1083 = vmatprep.subr.bf16.mxu0 0
  %1084 = vmatpush1.bf16.msra.mxu0 %v448
  %1085 = vmatprep.subr.bf16.mxu0 0
  %1086 = vmatpush1.bf16.msra.mxu0 0
  %1087 = vmatprep.subr.bf16.mxu0 0
  %1088 = vmatpush1.bf16.msra.mxu0 0
  %1089 = vmatprep.subr.bf16.mxu0 0
  %1090 = vmatpush1.bf16.msra.mxu0 0
  %1091 = vmatprep.subr.bf16.mxu0 0
  %1092 = vmatpush1.bf16.msra.mxu0 0
  %1093 = vmatprep.subr.bf16.mxu0 0
  %1094 = vmatpush1.bf16.msra.mxu0 0
  %1095 = vmatprep.subr.bf16.mxu0 0
  %1096 = vmatpush1.bf16.msra.mxu0 0
  %1097 = vmatprep.subr.bf16.mxu0 0
  %1098 = vmatpush1.bf16.msra.mxu0 0
  %1099 = vmatprep.subr.bf16.mxu0 0
  %1100 = vmatpush1.bf16.msra.mxu0 0
  %1101 = vmatprep.subr.bf16.mxu0 0
  %1102 = vmatpush1.bf16.msra.mxu0 0
  %1103 = vmatprep.subr.bf16.mxu0 0
  %1104 = vmatpush1.bf16.msra.mxu0 0
  %1105 = vmatprep.subr.bf16.mxu0 0
  %1106 = vmatpush1.bf16.msra.mxu0 0
  %1107 = vmatprep.subr.bf16.mxu0 0
  %1108 = vmatpush1.bf16.msra.mxu0 0
  %1109 = vmatprep.subr.bf16.mxu0 0
  %1110 = vmatpush1.bf16.msra.mxu0 0
  %1111 = vmatprep.subr.bf16.mxu0 0
  %1112 = vmatpush1.bf16.msra.mxu0 0
  %1113 = vmatprep.subr.bf16.mxu0 0
  %1114 = vmatpush1.bf16.msra.mxu0 0
  %1115 = vmatprep.mubr.bf16.mxu0 0
  %1116 = vmatmul.mubr.bf16.gmra.mrb[0].mxu0 %v1081
  %v1117 = vpop.f32.mrb[0].mxu0
  %v1118 = vadd.f32 %v1078, %v1117
  %v1119 = vpop.f32.mrb[0].mxu0
  %v1120 = vpop.f32.mrb[0].mxu0
  %v1121 = vpop.f32.mrb[0].mxu0
  %1122 = vdwg.mxu0
  %vm1123 = vcmp.ge.f32.partialorder %v1118, 0.0
  %v1124 = vmul.f32 %v1118, 0.01
  %v1125 = vsel %vm1123, %v1118, %v1124
  %v1126 = vlaneseq
  %v1127 = vshrl.u32 %v1126, 7
  %v1128 = vsub.s32 0, %v1127
  %v1129 = vrot.slane %v1125, %v1128
  %v1130 = vsel %vm442, %v1129, -1e+30
  %v1131 = vsel %vm443, %v1129, -1e+30
  %v1132 = vsel %vm573, %v1130, -inf
  %1133 = vmax.xlane.f32.xlu0 %v1132
  %v1134 = vpop.xlane.xlu0 %1133
  %v1135 = vsel %vm573, %v1131, -inf
  %1136 = vmax.xlane.f32.xlu0 %v1135
  %v1137 = vpop.xlane.xlu0 %1136
  %v1138 = vpack.c.bf16 %v1137, %v1134
  %1139 = vxpose.xlu0.c.b16.start [1/8] %v1138, 128
  %1140 = vxpose.xlu0.c.b16.cont [2/8] 0, 128
  %1141 = vxpose.xlu0.c.b16.cont [3/8] 0, 128
  %1142 = vxpose.xlu0.c.b16.cont [4/8] 0, 128
  %1143 = vxpose.xlu0.c.b16.cont [5/8] 0, 128
  %1144 = vxpose.xlu0.c.b16.cont [6/8] 0, 128
  %1145 = vxpose.xlu0.c.b16.cont [7/8] 0, 128
  %1146 = vxpose.xlu0.c.b16.end [8/8] 0, 128
  %v1147 = vpop.trf.xlu0
  %v1148 = vpop.trf.xlu0
  %v1149 = vpop.trf.xlu0
  %v1150 = vpop.trf.xlu0
  %v1151 = vpop.trf.xlu0
  %v1152 = vpop.trf.xlu0
  %v1153 = vpop.trf.xlu0
  %v1154 = vpop.trf.xlu0
  %v1156 = vsel %vm520, %v1147, 0
  %1158 = vmatprep.subr.bf16.mxu0 0
  %1159 = vmatpush1.bf16.msra.mxu0 %v448
  %1160 = vmatprep.subr.bf16.mxu0 0
  %1161 = vmatpush1.bf16.msra.mxu0 0
  %1162 = vmatprep.subr.bf16.mxu0 0
  %1163 = vmatpush1.bf16.msra.mxu0 0
  %1164 = vmatprep.subr.bf16.mxu0 0
  %1165 = vmatpush1.bf16.msra.mxu0 0
  %1166 = vmatprep.subr.bf16.mxu0 0
  %1167 = vmatpush1.bf16.msra.mxu0 0
  %1168 = vmatprep.subr.bf16.mxu0 0
  %1169 = vmatpush1.bf16.msra.mxu0 0
  %1170 = vmatprep.subr.bf16.mxu0 0
  %1171 = vmatpush1.bf16.msra.mxu0 0
  %1172 = vmatprep.subr.bf16.mxu0 0
  %1173 = vmatpush1.bf16.msra.mxu0 0
  %1174 = vmatprep.subr.bf16.mxu0 0
  %1175 = vmatpush1.bf16.msra.mxu0 0
  %1176 = vmatprep.subr.bf16.mxu0 0
  %1177 = vmatpush1.bf16.msra.mxu0 0
  %1178 = vmatprep.subr.bf16.mxu0 0
  %1179 = vmatpush1.bf16.msra.mxu0 0
  %1180 = vmatprep.subr.bf16.mxu0 0
  %1181 = vmatpush1.bf16.msra.mxu0 0
  %1182 = vmatprep.subr.bf16.mxu0 0
  %1183 = vmatpush1.bf16.msra.mxu0 0
  %1184 = vmatprep.subr.bf16.mxu0 0
  %1185 = vmatpush1.bf16.msra.mxu0 0
  %1186 = vmatprep.subr.bf16.mxu0 0
  %1187 = vmatpush1.bf16.msra.mxu0 0
  %1188 = vmatprep.subr.bf16.mxu0 0
  %1189 = vmatpush1.bf16.msra.mxu0 0
  %1190 = vmatprep.mubr.bf16.mxu0 0
  %1191 = vmatmul.mubr.bf16.gmra.mrb[0].mxu0 %v1156
  %v1192 = vpop.f32.mrb[0].mxu0
  %v1193 = vadd.f32 0.0, %v1192
  %v1194 = vpop.f32.mrb[0].mxu0
  %v1195 = vpop.f32.mrb[0].mxu0
  %v1196 = vpop.f32.mrb[0].mxu0
  %1197 = vdwg.mxu0
  %v1198 = vsub.f32 %v1125, %v1193
  %v1199 = vmul.f32 %v1198, 1.442695
  %v1200 = vpow.pop %v1199
  %v1201 = vpack.c.bf16 %v1200, %v1200
  %v1203 = vpack.i.b16 %v1201, %v1201
  %v1205 = vlaneseq
  %v1206 = vshrl.u32 %v1205, 7
  %v1207 = vsub.s32 0, %v1206
  %v1208 = vrot.slane %v1203, %v1207
  %v1209 = vmul.bf16 %v448, %v1208
  %v1210 = vunpack.c.l.bf16 %v1209
  %v1211 = vunpack.c.h.bf16 %v1209
  %v1212 = vsel %vm573, %v1210, 0.0
  %1213 = vadd.xlane.f32.xlu0 %v1212
  %v1214 = vpop.xlane.xlu0 %1213
  %v1215 = vsel %vm573, %v1211, 0.0
  %1216 = vadd.xlane.f32.xlu0 %v1215
  %v1217 = vpop.xlane.xlu0 %1216
  %v1218 = vpack.c.bf16 %v334, %v329
  %v1219 = vpack.c.bf16 %v339, %v339
  %v1221 = vsel %vm573, %v1209, 0
  %v1224 = vsel %vm665, %v1219, 0
  %1226 = vmatprep.subr.bf16.mxu0 0
  %1227 = vmatpush1.bf16.msra.mxu0 %v1218
  %1228 = vmatprep.subr.bf16.mxu0 0
  %1229 = vmatpush1.bf16.msra.mxu0 %v1224
  %1230 = vmatprep.subr.bf16.mxu0 0
  %1231 = vmatpush1.bf16.msra.mxu0 0
  %1232 = vmatprep.subr.bf16.mxu0 0
  %1233 = vmatpush1.bf16.msra.mxu0 0
  %1234 = vmatprep.subr.bf16.mxu0 0
  %1235 = vmatpush1.bf16.msra.mxu0 0
  %1236 = vmatprep.subr.bf16.mxu0 0
  %1237 = vmatpush1.bf16.msra.mxu0 0
  %1238 = vmatprep.subr.bf16.mxu0 0
  %1239 = vmatpush1.bf16.msra.mxu0 0
  %1240 = vmatprep.subr.bf16.mxu0 0
  %1241 = vmatpush1.bf16.msra.mxu0 0
  %1242 = vmatprep.subr.bf16.mxu0 0
  %1243 = vmatpush1.bf16.msra.mxu0 0
  %1244 = vmatprep.subr.bf16.mxu0 0
  %1245 = vmatpush1.bf16.msra.mxu0 0
  %1246 = vmatprep.subr.bf16.mxu0 0
  %1247 = vmatpush1.bf16.msra.mxu0 0
  %1248 = vmatprep.subr.bf16.mxu0 0
  %1249 = vmatpush1.bf16.msra.mxu0 0
  %1250 = vmatprep.subr.bf16.mxu0 0
  %1251 = vmatpush1.bf16.msra.mxu0 0
  %1252 = vmatprep.subr.bf16.mxu0 0
  %1253 = vmatpush1.bf16.msra.mxu0 0
  %1254 = vmatprep.subr.bf16.mxu0 0
  %1255 = vmatpush1.bf16.msra.mxu0 0
  %1256 = vmatprep.subr.bf16.mxu0 0
  %1257 = vmatpush1.bf16.msra.mxu0 0
  %1258 = vmatprep.mubr.bf16.mxu0 0
  %1259 = vmatmul.mubr.bf16.gmra.mrb[0].mxu0 %v1221
  %v1260 = vpop.f32.mrb[0].mxu0
  %v1261 = vadd.f32 0.0, %v1260
  %v1262 = vpop.f32.mrb[0].mxu0
  %v1263 = vpop.f32.mrb[0].mxu0
  %v1264 = vadd.f32 0.0, %v1263
  %v1265 = vpop.f32.mrb[0].mxu0
  %1266 = vdwg.mxu0
  %v1267 = vadd.f32 %v1214, 1e-16
  %v1268 = vadd.f32 %v1217, 1e-16
  %v1269 = vrcp.pop %v1267
  %v1270 = vrcp.pop %v1268
  %v1271 = vmul.f32 %v1261, %v1269
  %v1272 = vmul.f32 %v1264, %v1270
  %v1273 = vmax.f32 %v1271, 0.0
  %v1274 = vmax.f32 %v1272, 0.0
  %v1275 = vadd.f32 %v1003, %v1273
  %v1276 = vadd.f32 %v1004, %v1274
  %1277 = vst [vmem:[%s9] sm:$0xff] %v1275
  %1278 = vst [vmem:[%s9 + $0x8] sm:$0xff] %v1276
  // Predicated region
  $region34: #{gatr_to_e.1} parent=0 // pred_check
    _
  $region35: #{gatr_to_e.1} parent=0 // pred_check_branch
    %1280 = sbr.rel (0) target = $region37
  $region36: #{gatr_to_e.1} parent=0 // pred_region
    _
  $region37: #{gatr_to_e.1} parent=0 // pred_fallthru
    _
  // Predicated region
  $region38: #{gatr_to_e.1} parent=0 // pred_check
    _
  $region39: #{gatr_to_e.1} parent=0 // pred_check_branch
    %1282 = sbr.rel (0) target = $region41
  $region40: #{gatr_to_e.1} parent=0 // pred_region
    _
  $region41: #{gatr_to_e.1} parent=0 // pred_fallthru
    _

</llo_original>
